<compile_context>
chip_gen: v7x
topology: tpu7x:2x2x1
jax: 0.10.0
libtpu: 0.0.40
codegen_flags: <defaults>
</compile_context>

<pallas_src>
import functools
import math

import jax
import jax.numpy as jnp
from jax.experimental import pallas as pl
from jax.experimental.pallas import tpu as pltpu


# ---------------------------------------------------------------------------
# Fused kernel: conv1(1x1)+BN+GELU -> dw3x3 s2 +BN+GELU -> conv3(1x1)+BN
# ---------------------------------------------------------------------------
def _fused_patch_merge_kernel(x_ref, w1_ref, b1_ref, w2_ref, b2_ref,
                              w3_ref, b3_ref, o_ref, y_scr, *, tr, wo):
    """One (batch, output-row-tile) grid step.

    x_ref : (1, 2, 2, tr*wo, Cin) parity planes of x, rows pre-flattened:
            x_planes[p, q, i*wo + j, c] == x[2*i + p, 2*j + q, c]
    w1_ref: (Cin, C)   conv1 weight (BN scale folded in, compute dtype)
    w2_ref: (3, 3, C)  depthwise conv2 weight (BN scale folded, epilogue dtype)
    w3_ref: (C, C)     conv3 weight (BN scale folded in, compute dtype)
    b1/b2 : (1, C)     fused BN biases (epilogue dtype);  b3: (1, C) f32
    o_ref : (1, tr*wo, C)
    y_scr : (2, 2, tr+1, Wp, C) VMEM scratch (epilogue dtype) holding the
            conv1 output in parity layout.  q=0 planes: data at cols 0..wo-1.
            q=1 planes: left zero-pad at col 0, data at cols 1..wo.  Row 0 of
            the p=1 planes is the top halo carried from the previous row tile.
    """
    r = pl.program_id(1)
    cin = x_ref.shape[-1]
    cout = o_ref.shape[-1]
    trw = tr * wo
    wp = y_scr.shape[-2]
    edt = y_scr.dtype

    # ---- halo / pad management (scratch persists across grid steps) -------
    @pl.when(r == 0)
    def _init():
        # Top halo row of the p=1 parity planes (image row -1 == zero pad).
        # Re-zeroed at r == 0 of every batch so no stale halo leaks.
        for q in range(2):
            y_scr[1, q, 0, :, :] = jnp.zeros((wp, cout), edt)
        # Left zero-pad column of the q=1 parity planes (image col -1).  The
        # conv1 stores never touch col 0, so once per image is enough.
        for p in range(2):
            y_scr[p, 1, pl.ds(0, tr + 1), pl.ds(0, 1), :] = jnp.zeros(
                (tr + 1, 1, cout), edt)

    @pl.when(r > 0)
    def _carry():
        # Top halo = last parity-1 row of the previous row tile.  Must run
        # BEFORE rows 1..tr are overwritten below.
        for q in range(2):
            y_scr[1, q, 0, :, :] = y_scr[1, q, tr, :, :]

    # ---- stage 1: 1x1 conv + BN + GELU (one MXU matmul for all 4 planes) --
    x2d = x_ref[...].reshape(4 * trw, cin)               # relabel (pre-flat)
    y = jnp.dot(x2d, w1_ref[...], preferred_element_type=jnp.float32)
    y = jax.nn.gelu(y.astype(edt) + b1_ref[...])         # epilogue dtype
    for p in range(2):
        for q in range(2):
            pq = 2 * p + q
            y_pq = y[pq * trw:(pq + 1) * trw].reshape(tr, wo, cout)
            # q=0 planes at column offset 0 (aligned); q=1 at offset 1.
            y_scr[p, q, pl.ds(1, tr), pl.ds(q, wo), :] = y_pq

    # ---- stage 2: 3x3 depthwise conv (stride 2, pad 1) + BN + GELU --------
    # kh -> (parity plane p, scratch row start); kw -> (plane q, col start):
    #   kh: 0 -> (1, 0) uses halo row   | 1 -> (0, 1) | 2 -> (1, 1)
    #   kw: 0 -> (1, 0) uses zero-pad c0| 1 -> (0, 0) | 2 -> (1, 1)
    row_tap = ((1, 0), (0, 1), (1, 1))
    col_tap = ((1, 0), (0, 0), (1, 1))
    w2 = w2_ref[...]                                      # (3, 3, C)
    acc = None
    for kh in range(3):
        p, rs = row_tap[kh]
        for kw in range(3):
            q, cs = col_tap[kw]
            v = y_scr[p, q, pl.ds(rs, tr), pl.ds(cs, wo), :]    # (tr, wo, C)
            t = v * w2[kh:kh + 1, kw:kw + 1, :]
            acc = t if acc is None else acc + t                 # init from 1st tap
    z = jax.nn.gelu(acc + b2_ref[...])                          # (tr, wo, C)

    # ---- stage 3: 1x1 conv + BN (no activation), lane-dense output --------
    z2d = z.reshape(trw, cout).astype(w3_ref.dtype)
    o = jnp.dot(z2d, w3_ref[...], preferred_element_type=jnp.float32)
    o = o + b3_ref[...]                                         # f32 bias add
    o_ref[0] = o.astype(o_ref.dtype)


# ---------------------------------------------------------------------------
# Helpers
# ---------------------------------------------------------------------------
def _default_epilogue_dtype(compute_dtype):
    """bf16 epilogue only where the VPU/EUP support it (v6e / v7x)."""
    if jnp.dtype(compute_dtype) != jnp.dtype(jnp.bfloat16):
        return jnp.float32
    try:
        kind = jax.devices()[0].device_kind.lower()
    except Exception:
        return jnp.float32
    if any(v in kind for v in ("v2", "v3", "v4", "v5")):
        return jnp.float32   # no bf16 VALU/EUP on v5e and older
    return jnp.bfloat16


def _const_spec(block_shape, index_map):
    """BlockSpec for grid-invariant inputs: single-buffered when supported."""
    buffered = getattr(pl, "Buffered", None)
    if buffered is not None:
        try:
            return pl.BlockSpec(block_shape, index_map,
                                pipeline_mode=buffered(1))
        except TypeError:
            pass
    return pl.BlockSpec(block_shape, index_map)


def _row_tile_and_vmem(ho, wo, cin, cout, in_isz, out_isz, scr_isz,
                       weight_bytes, vmem_budget, row_tile):
    """Largest output-row tile dividing Ho that fits the VMEM budget (with
    double-buffered in/out blocks, weights and the persistent scratch), with
    (tr*wo) % 8 == 0 (or the full extent).  Also returns the padded scratch
    column dim and a vmem_limit_bytes suggestion (sized for v7x's 64 MiB)."""
    wp = -(-(wo + 1) // 8) * 8
    valid = [t for t in range(1, ho + 1)
             if ho % t == 0 and ((t * wo) % 8 == 0 or t == ho)]

    def cost(t):
        x_blk = 4 * t * wo * cin * in_isz
        o_blk = t * wo * cout * out_isz
        scr = 4 * (t + 1) * wp * cout * scr_isz
        return 2 * (x_blk + o_blk) + scr + weight_bytes

    if row_tile is None:
        fitting = [t for t in valid if cost(t) <= vmem_budget]
        tr = max(fitting) if fitting else min(valid)
    else:
        tr = row_tile
    vmem_limit = int(min(48 << 20, max(32 << 20, cost(tr) + (8 << 20))))
    return tr, wp, vmem_limit


# ---------------------------------------------------------------------------
# Wrapper
# ---------------------------------------------------------------------------
def patch_merging_forward(x, params, input_resolution, *, compute_dtype=None,
                          epilogue_dtype=None, row_tile=None,
                          vmem_budget=24 << 20):
    """x: (B, H*W, dim) token layout or (B, dim, H, W) NCHW.
    Returns (B, (H//2)*(W//2), out_dim)."""
    H, W = input_resolution
    if x.ndim == 3:
        B, L, dim = x.shape
        assert L == H * W, "input feature has wrong size"
        xi = x.reshape(B, H, W, dim)                 # -> NHWC
    else:
        xi = jnp.transpose(x, (0, 2, 3, 1))          # NCHW -> NHWC
        B, H, W, dim = xi.shape
    assert H % 2 == 0 and W % 2 == 0, "even input resolution required"

    out_dtype = x.dtype
    cdt = compute_dtype or x.dtype                        # MXU input dtype
    edt = epilogue_dtype or _default_epilogue_dtype(cdt)  # VPU/EUP/scratch dtype
    out_dim = params["w1"].shape[1]
    ho, wo = H // 2, W // 2

    # Fold eval-mode BN scales into the conv weights (bias adds stay in-kernel).
    w1 = (params["w1"] * params["scale1"][None, :]).astype(cdt)
    w2 = (params["w2"] * params["scale2"][None, None, :]).astype(edt)
    w3 = (params["w3"] * params["scale3"][None, :]).astype(cdt)
    b1 = params["bias1"].reshape(1, out_dim).astype(edt)
    b2 = params["bias2"].reshape(1, out_dim).astype(edt)
    b3 = params["bias3"].reshape(1, out_dim).astype(jnp.float32)

    # Parity (space-to-depth) planes of the INPUT, pre-flattened over (ho, wo)
    # so the in-kernel reshape feeding the MXU is a pure relabel:
    #   planes[b, p, q, i*wo + j, c] == x[b, 2*i + p, 2*j + q, c]
    planes = (xi.astype(cdt)
              .reshape(B, ho, 2, wo, 2, dim)
              .transpose(0, 2, 4, 1, 3, 5)
              .reshape(B, 2, 2, ho * wo, dim))

    weight_bytes = int(w1.size * w1.dtype.itemsize + w2.size * w2.dtype.itemsize
                       + w3.size * w3.dtype.itemsize
                       + (b1.size + b2.size + b3.size) * 4)
    tr, wp, vmem_limit = _row_tile_and_vmem(
        ho, wo, dim, out_dim,
        jnp.dtype(cdt).itemsize, jnp.dtype(out_dtype).itemsize,
        jnp.dtype(edt).itemsize, weight_bytes, vmem_budget, row_tile)
    assert ho % tr == 0 and ((tr * wo) % 8 == 0 or tr == ho), (tr, ho, wo)
    n_tiles = ho // tr

    kern = functools.partial(_fused_patch_merge_kernel, tr=tr, wo=wo)
    out = pl.pallas_call(
        kern,
        out_shape=jax.ShapeDtypeStruct((B, ho * wo, out_dim), out_dtype),
        grid=(B, n_tiles),
        in_specs=[
            pl.BlockSpec((1, 2, 2, tr * wo, dim),
                         lambda b, r: (b, 0, 0, r, 0)),
            _const_spec((dim, out_dim), lambda b, r: (0, 0)),
            _const_spec((1, out_dim), lambda b, r: (0, 0)),
            _const_spec((3, 3, out_dim), lambda b, r: (0, 0, 0)),
            _const_spec((1, out_dim), lambda b, r: (0, 0)),
            _const_spec((out_dim, out_dim), lambda b, r: (0, 0)),
            _const_spec((1, out_dim), lambda b, r: (0, 0)),
        ],
        out_specs=pl.BlockSpec((1, tr * wo, out_dim), lambda b, r: (b, r, 0)),
        scratch_shapes=[pltpu.VMEM((2, 2, tr + 1, wp, out_dim), edt)],
        compiler_params=pltpu.CompilerParams(
            dimension_semantics=("parallel", "arbitrary"),
            vmem_limit_bytes=vmem_limit),
    )(planes, w1, b1, w2, b2, w3, b3)
    return out                                        # (B, Ho*Wo, out_dim)


# ---------------------------------------------------------------------------
# Pure-JAX reference (unfused BN) for the correctness check
# ---------------------------------------------------------------------------
def reference_forward(x, params, input_resolution):
    H, W = input_resolution
    B, _, dim = x.shape
    out_dim = params["w1"].shape[1]
    xi = x.reshape(B, H, W, dim)
    y = jnp.einsum("bhwc,cd->bhwd", xi, params["w1"])
    y = y * params["scale1"] + params["bias1"]
    y = jax.nn.gelu(y)
    rhs = jnp.transpose(params["w2"], (2, 0, 1))[:, None, :, :]   # (C,1,3,3)
    z = jax.lax.conv_general_dilated(
        jnp.transpose(y, (0, 3, 1, 2)), rhs,
        window_strides=(2, 2), padding=((1, 1), (1, 1)),
        feature_group_count=out_dim)
    z = jnp.transpose(z, (0, 2, 3, 1)) * params["scale2"] + params["bias2"]
    z = jax.nn.gelu(z)
    o = jnp.einsum("bhwc,cd->bhwd", z, params["w3"])
    o = o * params["scale3"] + params["bias3"]
    Ho, Wo = z.shape[1], z.shape[2]
    return o.reshape(B, Ho * Wo, out_dim)


def make_params(dim, out_dim, key):
    ks = jax.random.split(key, 9)
    # fused eval-mode BatchNorm: y = conv(x) * scale + bias (non-trivial values
    # so the weight folding in the wrapper is actually exercised).
    def bn(k1, k2):
        scale = jax.random.uniform(k1, (out_dim,), jnp.float32, 0.5, 1.5)
        bias = 0.1 * jax.random.normal(k2, (out_dim,), jnp.float32)
        return scale, bias
    s1, b1 = bn(ks[3], ks[4]); s2, b2 = bn(ks[5], ks[6]); s3, b3 = bn(ks[7], ks[8])
    return {
        "w1": jax.random.normal(ks[0], (dim, out_dim), jnp.float32) / math.sqrt(dim),
        "scale1": s1, "bias1": b1,
        "w2": jax.random.normal(ks[1], (3, 3, out_dim), jnp.float32) * 0.1,
        "scale2": s2, "bias2": b2,
        "w3": jax.random.normal(ks[2], (out_dim, out_dim), jnp.float32) / math.sqrt(out_dim),
        "scale3": s3, "bias3": b3,
    }


if __name__ == "__main__":
    B, H, W, dim, out_dim = 2, 16, 16, 8, 32
    key = jax.random.PRNGKey(0)
    kx, kp = jax.random.split(key)
    x = jax.random.normal(kx, (B, H * W, dim), jnp.float32)   # token layout
    params = make_params(dim, out_dim, kp)

    ref = jax.block_until_ready(reference_forward(x, params, (H, W)))

    # f32 run forced to 2 row tiles per image: exercises the halo carry and
    # the partial (pad/halo only) scratch init at r == 0 of every batch.
    out = jax.block_until_ready(
        patch_merging_forward(x, params, (H, W), row_tile=4))
    assert out.shape == (B, (H // 2) * (W // 2), out_dim), out.shape
    assert jnp.allclose(out, ref, rtol=1e-4, atol=1e-4), \
        float(jnp.max(jnp.abs(out - ref)))

    # f32 run, auto row tile (tr == Ho: single tile per image, no carry).
    out_full = jax.block_until_ready(
        patch_merging_forward(x, params, (H, W)))
    assert jnp.allclose(out_full, ref, rtol=1e-4, atol=1e-4), \
        float(jnp.max(jnp.abs(out_full - ref)))

    # bf16 MXU run; bf16 epilogue is auto-enabled on v6e/v7x, f32 kept on v5e.
    out_bf16 = jax.block_until_ready(
        patch_merging_forward(x, params, (H, W), compute_dtype=jnp.bfloat16))
    assert jnp.allclose(out_bf16, ref, rtol=5e-2, atol=1e-1), \
        float(jnp.max(jnp.abs(out_bf16 - ref)))

    print("KERNEL_OK")
</pallas_src>

<mosaic_0001>
module attributes {stable_mosaic.version = 11 : i64} {
  func.func @_fused_patch_merge_kernel(%arg0: i32, %arg1: i32, %arg2: memref<1x2x2x32x8xf32, #tpu.memory_space<vmem>>, %arg3: memref<8x32xf32, #tpu.memory_space<vmem>>, %arg4: memref<1x32xf32, #tpu.memory_space<vmem>>, %arg5: memref<3x3x32xf32, #tpu.memory_space<vmem>>, %arg6: memref<1x32xf32, #tpu.memory_space<vmem>>, %arg7: memref<32x32xf32, #tpu.memory_space<vmem>>, %arg8: memref<1x32xf32, #tpu.memory_space<vmem>>, %arg9: memref<1x32x32xf32, #tpu.memory_space<vmem>>, %arg10: memref<2x2x5x16x32xf32, #tpu.memory_space<vmem>>) attributes {dimension_semantics = [#tpu.dimension_semantics<parallel>, #tpu.dimension_semantics<arbitrary>], iteration_bounds = array<i64: 2, 2>, scalar_prefetch = 0 : i64, scratch_operands = 1 : i64, tpu.core_type = #tpu.core_type<tc>, window_params = [{transform_indices = @transform_0, window_bounds = array<i64: 1, 2, 2, 32, 8>}, {pipeline_mode = #tpu.pipeline_mode<synchronous>, transform_indices = @transform_1, window_bounds = array<i64: 8, 32>}, {pipeline_mode = #tpu.pipeline_mode<synchronous>, transform_indices = @transform_2, window_bounds = array<i64: 1, 32>}, {pipeline_mode = #tpu.pipeline_mode<synchronous>, transform_indices = @transform_3, window_bounds = array<i64: 3, 3, 32>}, {pipeline_mode = #tpu.pipeline_mode<synchronous>, transform_indices = @transform_4, window_bounds = array<i64: 1, 32>}, {pipeline_mode = #tpu.pipeline_mode<synchronous>, transform_indices = @transform_5, window_bounds = array<i64: 32, 32>}, {pipeline_mode = #tpu.pipeline_mode<synchronous>, transform_indices = @transform_6, window_bounds = array<i64: 1, 32>}, {transform_indices = @transform_7, window_bounds = array<i64: 1, 32, 32>}]} {
    %c0_i32 = arith.constant 0 : i32
    %0 = arith.cmpi eq, %arg1, %c0_i32 : i32
    %1 = arith.extui %0 : i1 to i32
    %c0_i32_0 = arith.constant 0 : i32
    %2 = arith.cmpi ne, %1, %c0_i32_0 : i32
    scf.if %2 {
      %cst_96 = arith.constant 0.000000e+00 : f32
      %126 = vector.broadcast %cst_96 : f32 to vector<16x32xf32>
      %c1_97 = arith.constant 1 : index
      %c0_98 = arith.constant 0 : index
      %c0_99 = arith.constant 0 : index
      %c0_100 = arith.constant 0 : index
      %c0_101 = arith.constant 0 : index
      %127 = vector.load %arg10[%c1_97, %c0_98, %c0_99, %c0_100, %c0_101] : memref<2x2x5x16x32xf32, #tpu.memory_space<vmem>>, vector<1x1x1x16x32xf32>
      %128 = vector.shape_cast %127 : vector<1x1x1x16x32xf32> to vector<16x32xf32>
      %129 = vector.shape_cast %126 : vector<16x32xf32> to vector<1x1x1x16x32xf32>
      tpu.vector_store %arg10[%c1_97, %c0_98, %c0_99, %c0_100, %c0_101], %129 {strides = array<i32>} : memref<2x2x5x16x32xf32, #tpu.memory_space<vmem>>, vector<1x1x1x16x32xf32>,
      %cst_102 = arith.constant 0.000000e+00 : f32
      %130 = vector.broadcast %cst_102 : f32 to vector<16x32xf32>
      %c1_103 = arith.constant 1 : index
      %c1_104 = arith.constant 1 : index
      %c0_105 = arith.constant 0 : index
      %c0_106 = arith.constant 0 : index
      %c0_107 = arith.constant 0 : index
      %131 = vector.load %arg10[%c1_103, %c1_104, %c0_105, %c0_106, %c0_107] : memref<2x2x5x16x32xf32, #tpu.memory_space<vmem>>, vector<1x1x1x16x32xf32>
      %132 = vector.shape_cast %131 : vector<1x1x1x16x32xf32> to vector<16x32xf32>
      %133 = vector.shape_cast %130 : vector<16x32xf32> to vector<1x1x1x16x32xf32>
      tpu.vector_store %arg10[%c1_103, %c1_104, %c0_105, %c0_106, %c0_107], %133 {strides = array<i32>} : memref<2x2x5x16x32xf32, #tpu.memory_space<vmem>>, vector<1x1x1x16x32xf32>,
      %cst_108 = arith.constant 0.000000e+00 : f32
      %134 = vector.broadcast %cst_108 : f32 to vector<5x1x32xf32>
      %c0_109 = arith.constant 0 : index
      %c1_110 = arith.constant 1 : index
      %c0_111 = arith.constant 0 : index
      %c0_112 = arith.constant 0 : index
      %c0_113 = arith.constant 0 : index
      %135 = vector.load %arg10[%c0_109, %c1_110, %c0_111, %c0_112, %c0_113] : memref<2x2x5x16x32xf32, #tpu.memory_space<vmem>>, vector<1x1x5x1x32xf32>
      %136 = vector.shape_cast %135 : vector<1x1x5x1x32xf32> to vector<5x1x32xf32>
      %137 = vector.shape_cast %134 : vector<5x1x32xf32> to vector<1x1x5x1x32xf32>
      tpu.vector_store %arg10[%c0_109, %c1_110, %c0_111, %c0_112, %c0_113], %137 {strides = array<i32>} : memref<2x2x5x16x32xf32, #tpu.memory_space<vmem>>, vector<1x1x5x1x32xf32>,
      %cst_114 = arith.constant 0.000000e+00 : f32
      %138 = vector.broadcast %cst_114 : f32 to vector<5x1x32xf32>
      %c1_115 = arith.constant 1 : index
      %c1_116 = arith.constant 1 : index
      %c0_117 = arith.constant 0 : index
      %c0_118 = arith.constant 0 : index
      %c0_119 = arith.constant 0 : index
      %139 = vector.load %arg10[%c1_115, %c1_116, %c0_117, %c0_118, %c0_119] : memref<2x2x5x16x32xf32, #tpu.memory_space<vmem>>, vector<1x1x5x1x32xf32>
      %140 = vector.shape_cast %139 : vector<1x1x5x1x32xf32> to vector<5x1x32xf32>
      %141 = vector.shape_cast %138 : vector<5x1x32xf32> to vector<1x1x5x1x32xf32>
      tpu.vector_store %arg10[%c1_115, %c1_116, %c0_117, %c0_118, %c0_119], %141 {strides = array<i32>} : memref<2x2x5x16x32xf32, #tpu.memory_space<vmem>>, vector<1x1x5x1x32xf32>,
    } else {
    }
    %c0_i32_1 = arith.constant 0 : i32
    %3 = arith.cmpi sgt, %arg1, %c0_i32_1 : i32
    %4 = arith.extui %3 : i1 to i32
    %c0_i32_2 = arith.constant 0 : i32
    %5 = arith.cmpi ne, %4, %c0_i32_2 : i32
    scf.if %5 {
      %c1_96 = arith.constant 1 : index
      %c0_97 = arith.constant 0 : index
      %c4 = arith.constant 4 : index
      %c0_98 = arith.constant 0 : index
      %c0_99 = arith.constant 0 : index
      %126 = vector.load %arg10[%c1_96, %c0_97, %c4, %c0_98, %c0_99] : memref<2x2x5x16x32xf32, #tpu.memory_space<vmem>>, vector<1x1x1x16x32xf32>
      %127 = vector.shape_cast %126 : vector<1x1x1x16x32xf32> to vector<16x32xf32>
      %c1_100 = arith.constant 1 : index
      %c0_101 = arith.constant 0 : index
      %c0_102 = arith.constant 0 : index
      %c0_103 = arith.constant 0 : index
      %c0_104 = arith.constant 0 : index
      %128 = vector.load %arg10[%c1_100, %c0_101, %c0_102, %c0_103, %c0_104] : memref<2x2x5x16x32xf32, #tpu.memory_space<vmem>>, vector<1x1x1x16x32xf32>
      %129 = vector.shape_cast %128 : vector<1x1x1x16x32xf32> to vector<16x32xf32>
      %130 = vector.shape_cast %127 : vector<16x32xf32> to vector<1x1x1x16x32xf32>
      tpu.vector_store %arg10[%c1_100, %c0_101, %c0_102, %c0_103, %c0_104], %130 {strides = array<i32>} : memref<2x2x5x16x32xf32, #tpu.memory_space<vmem>>, vector<1x1x1x16x32xf32>,
      %c1_105 = arith.constant 1 : index
      %c1_106 = arith.constant 1 : index
      %c4_107 = arith.constant 4 : index
      %c0_108 = arith.constant 0 : index
      %c0_109 = arith.constant 0 : index
      %131 = vector.load %arg10[%c1_105, %c1_106, %c4_107, %c0_108, %c0_109] : memref<2x2x5x16x32xf32, #tpu.memory_space<vmem>>, vector<1x1x1x16x32xf32>
      %132 = vector.shape_cast %131 : vector<1x1x1x16x32xf32> to vector<16x32xf32>
      %c1_110 = arith.constant 1 : index
      %c1_111 = arith.constant 1 : index
      %c0_112 = arith.constant 0 : index
      %c0_113 = arith.constant 0 : index
      %c0_114 = arith.constant 0 : index
      %133 = vector.load %arg10[%c1_110, %c1_111, %c0_112, %c0_113, %c0_114] : memref<2x2x5x16x32xf32, #tpu.memory_space<vmem>>, vector<1x1x1x16x32xf32>
      %134 = vector.shape_cast %133 : vector<1x1x1x16x32xf32> to vector<16x32xf32>
      %135 = vector.shape_cast %132 : vector<16x32xf32> to vector<1x1x1x16x32xf32>
      tpu.vector_store %arg10[%c1_110, %c1_111, %c0_112, %c0_113, %c0_114], %135 {strides = array<i32>} : memref<2x2x5x16x32xf32, #tpu.memory_space<vmem>>, vector<1x1x1x16x32xf32>,
    } else {
    }
    %c0 = arith.constant 0 : index
    %c0_3 = arith.constant 0 : index
    %c0_4 = arith.constant 0 : index
    %c0_5 = arith.constant 0 : index
    %c0_6 = arith.constant 0 : index
    %6 = vector.load %arg2[%c0, %c0_3, %c0_4, %c0_5, %c0_6] : memref<1x2x2x32x8xf32, #tpu.memory_space<vmem>>, vector<1x2x2x32x8xf32>
    %7 = vector.shape_cast %6 : vector<1x2x2x32x8xf32> to vector<128x8xf32>
    %c0_7 = arith.constant 0 : index
    %c0_8 = arith.constant 0 : index
    %8 = vector.load %arg3[%c0_7, %c0_8] : memref<8x32xf32, #tpu.memory_space<vmem>>, vector<8x32xf32>
    %cst = arith.constant dense<0.000000e+00> : vector<128x32xf32>
    %9 = tpu.matmul %7, %8, %cst {dimension_numbers = #tpu.dot_dimension_numbers<[1], [0], [0], [1], [0, 0, 1, 1], [], []>} : vector<128x8xf32>, vector<8x32xf32>, vector<128x32xf32> -> vector<128x32xf32>
    %c0_9 = arith.constant 0 : index
    %c0_10 = arith.constant 0 : index
    %10 = vector.load %arg4[%c0_9, %c0_10] : memref<1x32xf32, #tpu.memory_space<vmem>>, vector<1x32xf32>
    %11 = vector.broadcast %10 : vector<1x32xf32> to vector<128x32xf32>
    %12 = arith.addf %9, %11 : vector<128x32xf32>
    %13 = arith.mulf %12, %12 : vector<128x32xf32>
    %14 = arith.mulf %12, %13 : vector<128x32xf32>
    %cst_11 = arith.constant 4.471500e-02 : f32
    %15 = vector.broadcast %cst_11 : f32 to vector<128x32xf32>
    %16 = arith.mulf %15, %14 : vector<128x32xf32>
    %17 = arith.addf %12, %16 : vector<128x32xf32>
    %cst_12 = arith.constant 0.797884583 : f32
    %18 = vector.broadcast %cst_12 : f32 to vector<128x32xf32>
    %19 = arith.mulf %18, %17 : vector<128x32xf32>
    %20 = math.tanh %19 : vector<128x32xf32>
    %cst_13 = arith.constant 1.000000e+00 : f32
    %21 = vector.broadcast %cst_13 : f32 to vector<128x32xf32>
    %22 = arith.addf %21, %20 : vector<128x32xf32>
    %cst_14 = arith.constant 5.000000e-01 : f32
    %23 = vector.broadcast %cst_14 : f32 to vector<128x32xf32>
    %24 = arith.mulf %23, %22 : vector<128x32xf32>
    %25 = arith.mulf %12, %24 : vector<128x32xf32>
    %26 = vector.extract_strided_slice %25 {offsets = [0, 0], sizes = [32, 32], strides = [1, 1]} : vector<128x32xf32> to vector<32x32xf32>
    %27 = vector.shape_cast %26 : vector<32x32xf32> to vector<4x8x32xf32>
    %c0_15 = arith.constant 0 : index
    %c0_16 = arith.constant 0 : index
    %c1 = arith.constant 1 : index
    %c0_17 = arith.constant 0 : index
    %c0_18 = arith.constant 0 : index
    %28 = vector.load %arg10[%c0_15, %c0_16, %c1, %c0_17, %c0_18] : memref<2x2x5x16x32xf32, #tpu.memory_space<vmem>>, vector<1x1x4x8x32xf32>
    %29 = vector.shape_cast %28 : vector<1x1x4x8x32xf32> to vector<4x8x32xf32>
    %30 = vector.shape_cast %27 : vector<4x8x32xf32> to vector<1x1x4x8x32xf32>
    tpu.vector_store %arg10[%c0_15, %c0_16, %c1, %c0_17, %c0_18], %30 {strides = array<i32>} : memref<2x2x5x16x32xf32, #tpu.memory_space<vmem>>, vector<1x1x4x8x32xf32>,
    %31 = vector.extract_strided_slice %25 {offsets = [32, 0], sizes = [32, 32], strides = [1, 1]} : vector<128x32xf32> to vector<32x32xf32>
    %32 = vector.shape_cast %31 : vector<32x32xf32> to vector<4x8x32xf32>
    %c0_19 = arith.constant 0 : index
    %c1_20 = arith.constant 1 : index
    %c1_21 = arith.constant 1 : index
    %c1_22 = arith.constant 1 : index
    %c0_23 = arith.constant 0 : index
    %33 = vector.load %arg10[%c0_19, %c1_20, %c1_21, %c1_22, %c0_23] : memref<2x2x5x16x32xf32, #tpu.memory_space<vmem>>, vector<1x1x4x8x32xf32>
    %34 = vector.shape_cast %33 : vector<1x1x4x8x32xf32> to vector<4x8x32xf32>
    %35 = vector.shape_cast %32 : vector<4x8x32xf32> to vector<1x1x4x8x32xf32>
    tpu.vector_store %arg10[%c0_19, %c1_20, %c1_21, %c1_22, %c0_23], %35 {strides = array<i32>} : memref<2x2x5x16x32xf32, #tpu.memory_space<vmem>>, vector<1x1x4x8x32xf32>,
    %36 = vector.extract_strided_slice %25 {offsets = [64, 0], sizes = [32, 32], strides = [1, 1]} : vector<128x32xf32> to vector<32x32xf32>
    %37 = vector.shape_cast %36 : vector<32x32xf32> to vector<4x8x32xf32>
    %c1_24 = arith.constant 1 : index
    %c0_25 = arith.constant 0 : index
    %c1_26 = arith.constant 1 : index
    %c0_27 = arith.constant 0 : index
    %c0_28 = arith.constant 0 : index
    %38 = vector.load %arg10[%c1_24, %c0_25, %c1_26, %c0_27, %c0_28] : memref<2x2x5x16x32xf32, #tpu.memory_space<vmem>>, vector<1x1x4x8x32xf32>
    %39 = vector.shape_cast %38 : vector<1x1x4x8x32xf32> to vector<4x8x32xf32>
    %40 = vector.shape_cast %37 : vector<4x8x32xf32> to vector<1x1x4x8x32xf32>
    tpu.vector_store %arg10[%c1_24, %c0_25, %c1_26, %c0_27, %c0_28], %40 {strides = array<i32>} : memref<2x2x5x16x32xf32, #tpu.memory_space<vmem>>, vector<1x1x4x8x32xf32>,
    %41 = vector.extract_strided_slice %25 {offsets = [96, 0], sizes = [32, 32], strides = [1, 1]} : vector<128x32xf32> to vector<32x32xf32>
    %42 = vector.shape_cast %41 : vector<32x32xf32> to vector<4x8x32xf32>
    %c1_29 = arith.constant 1 : index
    %c1_30 = arith.constant 1 : index
    %c1_31 = arith.constant 1 : index
    %c1_32 = arith.constant 1 : index
    %c0_33 = arith.constant 0 : index
    %43 = vector.load %arg10[%c1_29, %c1_30, %c1_31, %c1_32, %c0_33] : memref<2x2x5x16x32xf32, #tpu.memory_space<vmem>>, vector<1x1x4x8x32xf32>
    %44 = vector.shape_cast %43 : vector<1x1x4x8x32xf32> to vector<4x8x32xf32>
    %45 = vector.shape_cast %42 : vector<4x8x32xf32> to vector<1x1x4x8x32xf32>
    tpu.vector_store %arg10[%c1_29, %c1_30, %c1_31, %c1_32, %c0_33], %45 {strides = array<i32>} : memref<2x2x5x16x32xf32, #tpu.memory_space<vmem>>, vector<1x1x4x8x32xf32>,
    %c0_34 = arith.constant 0 : index
    %c0_35 = arith.constant 0 : index
    %c0_36 = arith.constant 0 : index
    %46 = vector.load %arg5[%c0_34, %c0_35, %c0_36] : memref<3x3x32xf32, #tpu.memory_space<vmem>>, vector<3x3x32xf32>
    %c1_37 = arith.constant 1 : index
    %c1_38 = arith.constant 1 : index
    %c0_39 = arith.constant 0 : index
    %c0_40 = arith.constant 0 : index
    %c0_41 = arith.constant 0 : index
    %47 = vector.load %arg10[%c1_37, %c1_38, %c0_39, %c0_40, %c0_41] : memref<2x2x5x16x32xf32, #tpu.memory_space<vmem>>, vector<1x1x4x8x32xf32>
    %48 = vector.shape_cast %47 : vector<1x1x4x8x32xf32> to vector<4x8x32xf32>
    %49 = vector.extract_strided_slice %46 {offsets = [0, 0, 0], sizes = [1, 1, 32], strides = [1, 1, 1]} : vector<3x3x32xf32> to vector<1x1x32xf32>
    %50 = vector.broadcast %49 : vector<1x1x32xf32> to vector<4x8x32xf32>
    %51 = arith.mulf %48, %50 : vector<4x8x32xf32>
    %c1_42 = arith.constant 1 : index
    %c0_43 = arith.constant 0 : index
    %c0_44 = arith.constant 0 : index
    %c0_45 = arith.constant 0 : index
    %c0_46 = arith.constant 0 : index
    %52 = vector.load %arg10[%c1_42, %c0_43, %c0_44, %c0_45, %c0_46] : memref<2x2x5x16x32xf32, #tpu.memory_space<vmem>>, vector<1x1x4x8x32xf32>
    %53 = vector.shape_cast %52 : vector<1x1x4x8x32xf32> to vector<4x8x32xf32>
    %54 = vector.extract_strided_slice %46 {offsets = [0, 1, 0], sizes = [1, 1, 32], strides = [1, 1, 1]} : vector<3x3x32xf32> to vector<1x1x32xf32>
    %55 = vector.broadcast %54 : vector<1x1x32xf32> to vector<4x8x32xf32>
    %56 = arith.mulf %53, %55 : vector<4x8x32xf32>
    %57 = arith.addf %51, %56 : vector<4x8x32xf32>
    %c1_47 = arith.constant 1 : index
    %c1_48 = arith.constant 1 : index
    %c0_49 = arith.constant 0 : index
    %c1_50 = arith.constant 1 : index
    %c0_51 = arith.constant 0 : index
    %58 = vector.load %arg10[%c1_47, %c1_48, %c0_49, %c1_50, %c0_51] : memref<2x2x5x16x32xf32, #tpu.memory_space<vmem>>, vector<1x1x4x8x32xf32>
    %59 = vector.shape_cast %58 : vector<1x1x4x8x32xf32> to vector<4x8x32xf32>
    %60 = vector.extract_strided_slice %46 {offsets = [0, 2, 0], sizes = [1, 1, 32], strides = [1, 1, 1]} : vector<3x3x32xf32> to vector<1x1x32xf32>
    %61 = vector.broadcast %60 : vector<1x1x32xf32> to vector<4x8x32xf32>
    %62 = arith.mulf %59, %61 : vector<4x8x32xf32>
    %63 = arith.addf %57, %62 : vector<4x8x32xf32>
    %c0_52 = arith.constant 0 : index
    %c1_53 = arith.constant 1 : index
    %c1_54 = arith.constant 1 : index
    %c0_55 = arith.constant 0 : index
    %c0_56 = arith.constant 0 : index
    %64 = vector.load %arg10[%c0_52, %c1_53, %c1_54, %c0_55, %c0_56] : memref<2x2x5x16x32xf32, #tpu.memory_space<vmem>>, vector<1x1x4x8x32xf32>
    %65 = vector.shape_cast %64 : vector<1x1x4x8x32xf32> to vector<4x8x32xf32>
    %66 = vector.extract_strided_slice %46 {offsets = [1, 0, 0], sizes = [1, 1, 32], strides = [1, 1, 1]} : vector<3x3x32xf32> to vector<1x1x32xf32>
    %67 = vector.broadcast %66 : vector<1x1x32xf32> to vector<4x8x32xf32>
    %68 = arith.mulf %65, %67 : vector<4x8x32xf32>
    %69 = arith.addf %63, %68 : vector<4x8x32xf32>
    %c0_57 = arith.constant 0 : index
    %c0_58 = arith.constant 0 : index
    %c1_59 = arith.constant 1 : index
    %c0_60 = arith.constant 0 : index
    %c0_61 = arith.constant 0 : index
    %70 = vector.load %arg10[%c0_57, %c0_58, %c1_59, %c0_60, %c0_61] : memref<2x2x5x16x32xf32, #tpu.memory_space<vmem>>, vector<1x1x4x8x32xf32>
    %71 = vector.shape_cast %70 : vector<1x1x4x8x32xf32> to vector<4x8x32xf32>
    %72 = vector.extract_strided_slice %46 {offsets = [1, 1, 0], sizes = [1, 1, 32], strides = [1, 1, 1]} : vector<3x3x32xf32> to vector<1x1x32xf32>
    %73 = vector.broadcast %72 : vector<1x1x32xf32> to vector<4x8x32xf32>
    %74 = arith.mulf %71, %73 : vector<4x8x32xf32>
    %75 = arith.addf %69, %74 : vector<4x8x32xf32>
    %c0_62 = arith.constant 0 : index
    %c1_63 = arith.constant 1 : index
    %c1_64 = arith.constant 1 : index
    %c1_65 = arith.constant 1 : index
    %c0_66 = arith.constant 0 : index
    %76 = vector.load %arg10[%c0_62, %c1_63, %c1_64, %c1_65, %c0_66] : memref<2x2x5x16x32xf32, #tpu.memory_space<vmem>>, vector<1x1x4x8x32xf32>
    %77 = vector.shape_cast %76 : vector<1x1x4x8x32xf32> to vector<4x8x32xf32>
    %78 = vector.extract_strided_slice %46 {offsets = [1, 2, 0], sizes = [1, 1, 32], strides = [1, 1, 1]} : vector<3x3x32xf32> to vector<1x1x32xf32>
    %79 = vector.broadcast %78 : vector<1x1x32xf32> to vector<4x8x32xf32>
    %80 = arith.mulf %77, %79 : vector<4x8x32xf32>
    %81 = arith.addf %75, %80 : vector<4x8x32xf32>
    %c1_67 = arith.constant 1 : index
    %c1_68 = arith.constant 1 : index
    %c1_69 = arith.constant 1 : index
    %c0_70 = arith.constant 0 : index
    %c0_71 = arith.constant 0 : index
    %82 = vector.load %arg10[%c1_67, %c1_68, %c1_69, %c0_70, %c0_71] : memref<2x2x5x16x32xf32, #tpu.memory_space<vmem>>, vector<1x1x4x8x32xf32>
    %83 = vector.shape_cast %82 : vector<1x1x4x8x32xf32> to vector<4x8x32xf32>
    %84 = vector.extract_strided_slice %46 {offsets = [2, 0, 0], sizes = [1, 1, 32], strides = [1, 1, 1]} : vector<3x3x32xf32> to vector<1x1x32xf32>
    %85 = vector.broadcast %84 : vector<1x1x32xf32> to vector<4x8x32xf32>
    %86 = arith.mulf %83, %85 : vector<4x8x32xf32>
    %87 = arith.addf %81, %86 : vector<4x8x32xf32>
    %c1_72 = arith.constant 1 : index
    %c0_73 = arith.constant 0 : index
    %c1_74 = arith.constant 1 : index
    %c0_75 = arith.constant 0 : index
    %c0_76 = arith.constant 0 : index
    %88 = vector.load %arg10[%c1_72, %c0_73, %c1_74, %c0_75, %c0_76] : memref<2x2x5x16x32xf32, #tpu.memory_space<vmem>>, vector<1x1x4x8x32xf32>
    %89 = vector.shape_cast %88 : vector<1x1x4x8x32xf32> to vector<4x8x32xf32>
    %90 = vector.extract_strided_slice %46 {offsets = [2, 1, 0], sizes = [1, 1, 32], strides = [1, 1, 1]} : vector<3x3x32xf32> to vector<1x1x32xf32>
    %91 = vector.broadcast %90 : vector<1x1x32xf32> to vector<4x8x32xf32>
    %92 = arith.mulf %89, %91 : vector<4x8x32xf32>
    %93 = arith.addf %87, %92 : vector<4x8x32xf32>
    %c1_77 = arith.constant 1 : index
    %c1_78 = arith.constant 1 : index
    %c1_79 = arith.constant 1 : index
    %c1_80 = arith.constant 1 : index
    %c0_81 = arith.constant 0 : index
    %94 = vector.load %arg10[%c1_77, %c1_78, %c1_79, %c1_80, %c0_81] : memref<2x2x5x16x32xf32, #tpu.memory_space<vmem>>, vector<1x1x4x8x32xf32>
    %95 = vector.shape_cast %94 : vector<1x1x4x8x32xf32> to vector<4x8x32xf32>
    %96 = vector.extract_strided_slice %46 {offsets = [2, 2, 0], sizes = [1, 1, 32], strides = [1, 1, 1]} : vector<3x3x32xf32> to vector<1x1x32xf32>
    %97 = vector.broadcast %96 : vector<1x1x32xf32> to vector<4x8x32xf32>
    %98 = arith.mulf %95, %97 : vector<4x8x32xf32>
    %99 = arith.addf %93, %98 : vector<4x8x32xf32>
    %c0_82 = arith.constant 0 : index
    %c0_83 = arith.constant 0 : index
    %100 = vector.load %arg6[%c0_82, %c0_83] : memref<1x32xf32, #tpu.memory_space<vmem>>, vector<1x32xf32>
    %101 = vector.shape_cast %100 : vector<1x32xf32> to vector<1x1x32xf32>
    %102 = vector.broadcast %101 : vector<1x1x32xf32> to vector<4x8x32xf32>
    %103 = arith.addf %99, %102 : vector<4x8x32xf32>
    %104 = arith.mulf %103, %103 : vector<4x8x32xf32>
    %105 = arith.mulf %103, %104 : vector<4x8x32xf32>
    %cst_84 = arith.constant 4.471500e-02 : f32
    %106 = vector.broadcast %cst_84 : f32 to vector<4x8x32xf32>
    %107 = arith.mulf %106, %105 : vector<4x8x32xf32>
    %108 = arith.addf %103, %107 : vector<4x8x32xf32>
    %cst_85 = arith.constant 0.797884583 : f32
    %109 = vector.broadcast %cst_85 : f32 to vector<4x8x32xf32>
    %110 = arith.mulf %109, %108 : vector<4x8x32xf32>
    %111 = math.tanh %110 : vector<4x8x32xf32>
    %cst_86 = arith.constant 1.000000e+00 : f32
    %112 = vector.broadcast %cst_86 : f32 to vector<4x8x32xf32>
    %113 = arith.addf %112, %111 : vector<4x8x32xf32>
    %cst_87 = arith.constant 5.000000e-01 : f32
    %114 = vector.broadcast %cst_87 : f32 to vector<4x8x32xf32>
    %115 = arith.mulf %114, %113 : vector<4x8x32xf32>
    %116 = arith.mulf %103, %115 : vector<4x8x32xf32>
    %117 = vector.shape_cast %116 : vector<4x8x32xf32> to vector<32x32xf32>
    %c0_88 = arith.constant 0 : index
    %c0_89 = arith.constant 0 : index
    %118 = vector.load %arg7[%c0_88, %c0_89] : memref<32x32xf32, #tpu.memory_space<vmem>>, vector<32x32xf32>
    %cst_90 = arith.constant dense<0.000000e+00> : vector<32x32xf32>
    %119 = tpu.matmul %117, %118, %cst_90 {dimension_numbers = #tpu.dot_dimension_numbers<[1], [0], [0], [1], [0, 0, 1, 1], [], []>} : vector<32x32xf32>, vector<32x32xf32>, vector<32x32xf32> -> vector<32x32xf32>
    %c0_91 = arith.constant 0 : index
    %c0_92 = arith.constant 0 : index
    %120 = vector.load %arg8[%c0_91, %c0_92] : memref<1x32xf32, #tpu.memory_space<vmem>>, vector<1x32xf32>
    %121 = vector.broadcast %120 : vector<1x32xf32> to vector<32x32xf32>
    %122 = arith.addf %119, %121 : vector<32x32xf32>
    %c0_93 = arith.constant 0 : index
    %c0_94 = arith.constant 0 : index
    %c0_95 = arith.constant 0 : index
    %123 = vector.load %arg9[%c0_93, %c0_94, %c0_95] : memref<1x32x32xf32, #tpu.memory_space<vmem>>, vector<1x32x32xf32>
    %124 = vector.shape_cast %123 : vector<1x32x32xf32> to vector<32x32xf32>
    %125 = vector.shape_cast %122 : vector<32x32xf32> to vector<1x32x32xf32>
    tpu.vector_store %arg9[%c0_93, %c0_94, %c0_95], %125 {strides = array<i32>} : memref<1x32x32xf32, #tpu.memory_space<vmem>>, vector<1x32x32xf32>,
    return
  }
  func.func @transform_0(%arg0: i32, %arg1: i32) -> (i32, i32, i32, i32, i32) {
    %c0_i32 = arith.constant 0 : i32
    %c0_i32_0 = arith.constant 0 : i32
    %c0_i32_1 = arith.constant 0 : i32
    %c0_i32_2 = arith.constant 0 : i32
    return %arg0, %c0_i32, %c0_i32_0, %arg1, %c0_i32_1 : i32, i32, i32, i32, i32
  }
  func.func @transform_1(%arg0: i32, %arg1: i32) -> (i32, i32) {
    %c0_i32 = arith.constant 0 : i32
    %c0_i32_0 = arith.constant 0 : i32
    %c0_i32_1 = arith.constant 0 : i32
    return %c0_i32, %c0_i32_0 : i32, i32
  }
  func.func @transform_2(%arg0: i32, %arg1: i32) -> (i32, i32) {
    %c0_i32 = arith.constant 0 : i32
    %c0_i32_0 = arith.constant 0 : i32
    %c0_i32_1 = arith.constant 0 : i32
    return %c0_i32, %c0_i32_0 : i32, i32
  }
  func.func @transform_3(%arg0: i32, %arg1: i32) -> (i32, i32, i32) {
    %c0_i32 = arith.constant 0 : i32
    %c0_i32_0 = arith.constant 0 : i32
    %c0_i32_1 = arith.constant 0 : i32
    %c0_i32_2 = arith.constant 0 : i32
    return %c0_i32, %c0_i32_0, %c0_i32_1 : i32, i32, i32
  }
  func.func @transform_4(%arg0: i32, %arg1: i32) -> (i32, i32) {
    %c0_i32 = arith.constant 0 : i32
    %c0_i32_0 = arith.constant 0 : i32
    %c0_i32_1 = arith.constant 0 : i32
    return %c0_i32, %c0_i32_0 : i32, i32
  }
  func.func @transform_5(%arg0: i32, %arg1: i32) -> (i32, i32) {
    %c0_i32 = arith.constant 0 : i32
    %c0_i32_0 = arith.constant 0 : i32
    %c0_i32_1 = arith.constant 0 : i32
    return %c0_i32, %c0_i32_0 : i32, i32
  }
  func.func @transform_6(%arg0: i32, %arg1: i32) -> (i32, i32) {
    %c0_i32 = arith.constant 0 : i32
    %c0_i32_0 = arith.constant 0 : i32
    %c0_i32_1 = arith.constant 0 : i32
    return %c0_i32, %c0_i32_0 : i32, i32
  }
  func.func @transform_7(%arg0: i32, %arg1: i32) -> (i32, i32, i32) {
    %c0_i32 = arith.constant 0 : i32
    %c0_i32_0 = arith.constant 0 : i32
    return %arg0, %arg1, %c0_i32 : i32, i32, i32
  }
}

</mosaic_0001>

<llo_original>
// kernel: tpu_custom_call.1
$region0: #{tpu_custom_call.1}
  #allocation0 [shape = 'u32[]', space=smem, size = 0x4, offset = 0x4, fixed_abs, tag = 'smem constant byte address 0x4 - core index']
  #allocation1 [shape = 'u32[144,128]{1,0:T(1,128)}', space=vmem, size = 0x12000, scoped, tag = 'internal scratch']
  #allocation2 [shape = 'f32[2,2,5,16,32]{4,3,2,1,0:T(8,128)}', space=vmem, size = 0x28000, scoped, tag = 'scratch operand']
  %s0 = inlined_call_operand.vmem [shape: f32[2,2,2,64,8], index: 0, kind: input, shape index: {}]
  %s1 = inlined_call_operand.vmem [shape: f32[8,32], index: 1, kind: input, shape index: {}]
  %s2 = inlined_call_operand.vmem [shape: f32[1,32], index: 2, kind: input, shape index: {}]
  %s3 = inlined_call_operand.vmem [shape: f32[3,3,32], index: 3, kind: input, shape index: {}]
  %s4 = inlined_call_operand.vmem [shape: f32[1,32], index: 4, kind: input, shape index: {}]
  %s5 = inlined_call_operand.vmem [shape: f32[32,32], index: 5, kind: input, shape index: {}]
  %s6 = inlined_call_operand.vmem [shape: f32[1,32], index: 6, kind: input, shape index: {}]
  %s7 = inlined_call_operand.vmem [shape: f32[2,64,32], index: 7, kind: output, shape index: {}]
  %s8 = sld [smem:[#allocation0]]
  $region107: #{tpu_custom_call.1} parent=0
    _
  %s10 = ssub.s32 1, %s8
  %s11 = scalar_select 0, %s10, %s8
  $region1: #{tpu_custom_call.1} parent=0
    #allocation3 [shape = 'u8[131072]{0}', space=vmem, size = 0x20000, scoped, tag = 'input window, operand 0']
    loop: start=0, step=1, limit=6
    $region2: #{tpu_custom_call.1} parent=1 // loop_pre_header
      _
    $region3: #{tpu_custom_call.1} parent=1 // loop_header
      %s13 = sphi 0, %s17
      %p14 = scmp.ge.s32.totalorder %s13, 6
      %s20 = sphi 0, %s32
      %s21 = sphi 0, %s28
      %s22 = sphi 0, %s20
      %s23 = sphi 0, %s21
      %s24 = sphi 0, %s22
      %s25 = sphi 0, %s23
      %s37 = sphi 0, %s39
      %s40 = sphi 0, %s37
      %s41 = sphi 0, %s40
      %s57 = sphi 0, %s41
      %s61 = sphi 0, %s61
      %s63 = sphi 0, %s61
      %s64 = sphi 0, %s63
      %s78 = sphi 0, %s64
      %s82 = sphi 0, %s82
      %s84 = sphi 0, %s82
      %s85 = sphi 0, %s84
      %s99 = sphi 0, %s85
      %s103 = sphi 0, %s103
      %s105 = sphi 0, %s103
      %s106 = sphi 0, %s105
      %s120 = sphi 0, %s106
      %s124 = sphi 0, %s124
      %s126 = sphi 0, %s124
      %s127 = sphi 0, %s126
      %s141 = sphi 0, %s127
      %s145 = sphi 0, %s145
      %s147 = sphi 0, %s145
      %s148 = sphi 0, %s147
      %s162 = sphi 0, %s148
      %s166 = sphi 0, %s166
      %s168 = sphi 0, %s166
      %s169 = sphi 0, %s168
      %s183 = sphi 0, %s169
      %s191 = sphi 0, %s193
      %s194 = sphi 0, %s191
      %s195 = sphi 0, %s194
      %s211 = sphi 0, %s195
    $region4: #{tpu_custom_call.1} parent=1 // loop_header_branch
      %16 = sbr.rel (%p14) target = $region8
    $region5: #{tpu_custom_call.1} parent=1 // loop_body
      %s18 = ssub.s32 %s13, 1
      %s19 = ssub.s32 %s13, 2
      %s26 = sadd.s32 1, %s21
      %p27 = scmp.ge.s32.totalorder %s26, 2
      %s28 = scalar_select %p27, 0, %s26
      %s29 = sadd.s32 1, %s20
      %s30 = scalar_select %p27, %s29, %s20
      %p31 = scmp.ge.s32.totalorder %s30, 2
      %s32 = scalar_select %p31, 0, %s30
      %s33 = ssub.s32 %s20, %s32
      %s34 = ssub.s32 %s21, %s28
      %s35 = sor.u32 %s33, %s34
      %p36 = scmp.eq.s32.totalorder %s35, 0
      %s38 = sadd.s32 %s37, 1
      %s39 = scalar_select %p36, %s37, %s38
      %p42 = pneg %p36
      %p43 = scmp.eq.s32.totalorder %s13, 3
      %p44 = por %p42, %p43
      %p45 = scmp.ne.s32.totalorder %s37, %s40
      %p46 = scmp.eq.s32.totalorder %s13, 0
      %p47 = por %p45, %p46
      %p48 = scmp.ne.s32.totalorder %s37, %s40
      %p49 = scmp.eq.s32.totalorder %s18, 3
      %p50 = por %p48, %p49
      %p51 = scmp.ne.s32.totalorder %s40, %s41
      %p52 = scmp.eq.s32.totalorder %s18, 0
      %p53 = por %p51, %p52
      %p54 = scmp.ne.s32.totalorder %s40, %s41
      %p55 = scmp.eq.s32.totalorder %s19, 3
      %p56 = por %p54, %p55
      %p58 = scmp.ne.s32.totalorder %s41, %s57
      %p59 = scmp.eq.s32.totalorder %s19, 0
      %p60 = por %p58, %p59
      %s62 = sadd.s32 %s61, 1
      %p65 = scmp.eq.s32.totalorder %s13, 3
      %p66 = scmp.ne.s32.totalorder %s61, %s63
      %p67 = scmp.eq.s32.totalorder %s13, 0
      %p68 = por %p66, %p67
      %p69 = scmp.ne.s32.totalorder %s61, %s63
      %p70 = scmp.eq.s32.totalorder %s18, 3
      %p71 = por %p69, %p70
      %p72 = scmp.ne.s32.totalorder %s63, %s64
      %p73 = scmp.eq.s32.totalorder %s18, 0
      %p74 = por %p72, %p73
      %p75 = scmp.ne.s32.totalorder %s63, %s64
      %p76 = scmp.eq.s32.totalorder %s19, 3
      %p77 = por %p75, %p76
      %p79 = scmp.ne.s32.totalorder %s64, %s78
      %p80 = scmp.eq.s32.totalorder %s19, 0
      %p81 = por %p79, %p80
      %s83 = sadd.s32 %s82, 1
      %p86 = scmp.eq.s32.totalorder %s13, 3
      %p87 = scmp.ne.s32.totalorder %s82, %s84
      %p88 = scmp.eq.s32.totalorder %s13, 0
      %p89 = por %p87, %p88
      %p90 = scmp.ne.s32.totalorder %s82, %s84
      %p91 = scmp.eq.s32.totalorder %s18, 3
      %p92 = por %p90, %p91
      %p93 = scmp.ne.s32.totalorder %s84, %s85
      %p94 = scmp.eq.s32.totalorder %s18, 0
      %p95 = por %p93, %p94
      %p96 = scmp.ne.s32.totalorder %s84, %s85
      %p97 = scmp.eq.s32.totalorder %s19, 3
      %p98 = por %p96, %p97
      %p100 = scmp.ne.s32.totalorder %s85, %s99
      %p101 = scmp.eq.s32.totalorder %s19, 0
      %p102 = por %p100, %p101
      %s104 = sadd.s32 %s103, 1
      %p107 = scmp.eq.s32.totalorder %s13, 3
      %p108 = scmp.ne.s32.totalorder %s103, %s105
      %p109 = scmp.eq.s32.totalorder %s13, 0
      %p110 = por %p108, %p109
      %p111 = scmp.ne.s32.totalorder %s103, %s105
      %p112 = scmp.eq.s32.totalorder %s18, 3
      %p113 = por %p111, %p112
      %p114 = scmp.ne.s32.totalorder %s105, %s106
      %p115 = scmp.eq.s32.totalorder %s18, 0
      %p116 = por %p114, %p115
      %p117 = scmp.ne.s32.totalorder %s105, %s106
      %p118 = scmp.eq.s32.totalorder %s19, 3
      %p119 = por %p117, %p118
      %p121 = scmp.ne.s32.totalorder %s106, %s120
      %p122 = scmp.eq.s32.totalorder %s19, 0
      %p123 = por %p121, %p122
      %s125 = sadd.s32 %s124, 1
      %p128 = scmp.eq.s32.totalorder %s13, 3
      %p129 = scmp.ne.s32.totalorder %s124, %s126
      %p130 = scmp.eq.s32.totalorder %s13, 0
      %p131 = por %p129, %p130
      %p132 = scmp.ne.s32.totalorder %s124, %s126
      %p133 = scmp.eq.s32.totalorder %s18, 3
      %p134 = por %p132, %p133
      %p135 = scmp.ne.s32.totalorder %s126, %s127
      %p136 = scmp.eq.s32.totalorder %s18, 0
      %p137 = por %p135, %p136
      %p138 = scmp.ne.s32.totalorder %s126, %s127
      %p139 = scmp.eq.s32.totalorder %s19, 3
      %p140 = por %p138, %p139
      %p142 = scmp.ne.s32.totalorder %s127, %s141
      %p143 = scmp.eq.s32.totalorder %s19, 0
      %p144 = por %p142, %p143
      %s146 = sadd.s32 %s145, 1
      %p149 = scmp.eq.s32.totalorder %s13, 3
      %p150 = scmp.ne.s32.totalorder %s145, %s147
      %p151 = scmp.eq.s32.totalorder %s13, 0
      %p152 = por %p150, %p151
      %p153 = scmp.ne.s32.totalorder %s145, %s147
      %p154 = scmp.eq.s32.totalorder %s18, 3
      %p155 = por %p153, %p154
      %p156 = scmp.ne.s32.totalorder %s147, %s148
      %p157 = scmp.eq.s32.totalorder %s18, 0
      %p158 = por %p156, %p157
      %p159 = scmp.ne.s32.totalorder %s147, %s148
      %p160 = scmp.eq.s32.totalorder %s19, 3
      %p161 = por %p159, %p160
      %p163 = scmp.ne.s32.totalorder %s148, %s162
      %p164 = scmp.eq.s32.totalorder %s19, 0
      %p165 = por %p163, %p164
      %s167 = sadd.s32 %s166, 1
      %p170 = scmp.eq.s32.totalorder %s13, 3
      %p171 = scmp.ne.s32.totalorder %s166, %s168
      %p172 = scmp.eq.s32.totalorder %s13, 0
      %p173 = por %p171, %p172
      %p174 = scmp.ne.s32.totalorder %s166, %s168
      %p175 = scmp.eq.s32.totalorder %s18, 3
      %p176 = por %p174, %p175
      %p177 = scmp.ne.s32.totalorder %s168, %s169
      %p178 = scmp.eq.s32.totalorder %s18, 0
      %p179 = por %p177, %p178
      %p180 = scmp.ne.s32.totalorder %s168, %s169
      %p181 = scmp.eq.s32.totalorder %s19, 3
      %p182 = por %p180, %p181
      %p184 = scmp.ne.s32.totalorder %s169, %s183
      %p185 = scmp.eq.s32.totalorder %s19, 0
      %p186 = por %p184, %p185
      %s187 = ssub.s32 %s20, %s32
      %s188 = ssub.s32 %s21, %s28
      %s189 = sor.u32 %s187, %s188
      %p190 = scmp.eq.s32.totalorder %s189, 0
      %s192 = sadd.s32 %s191, 1
      %s193 = scalar_select %p190, %s191, %s192
      %p196 = pneg %p190
      %p197 = scmp.eq.s32.totalorder %s13, 3
      %p198 = por %p196, %p197
      %p199 = scmp.ne.s32.totalorder %s191, %s194
      %p200 = scmp.eq.s32.totalorder %s13, 0
      %p201 = por %p199, %p200
      %p202 = scmp.ne.s32.totalorder %s191, %s194
      %p203 = scmp.eq.s32.totalorder %s18, 3
      %p204 = por %p202, %p203
      %p205 = scmp.ne.s32.totalorder %s194, %s195
      %p206 = scmp.eq.s32.totalorder %s18, 0
      %p207 = por %p205, %p206
      %p208 = scmp.ne.s32.totalorder %s194, %s195
      %p209 = scmp.eq.s32.totalorder %s19, 3
      %p210 = por %p208, %p209
      %p212 = scmp.ne.s32.totalorder %s195, %s211
      %p213 = scmp.eq.s32.totalorder %s19, 0
      %p214 = por %p212, %p213
      %p215 = scmp.le.s32.totalorder 1, %s13
      %p216 = scmp.lt.s32.totalorder %s13, 5
      %p217 = pnand %p215, %p216
      %p218 = pneg %p217
      // Predicated region
      $region9: #{tpu_custom_call.1} parent=5 // pred_check
        _
      $region10: #{tpu_custom_call.1} parent=5 // pred_check_branch
        %220 = sbr.rel (%p217) target = $region12
      $region11: #{tpu_custom_call.1} parent=5 // pred_region
        %s221 = ssub.s32 %s13, 1
        // Predicated region
        $region13: #{tpu_custom_call.1} parent=11 // pred_check
          %p222 = pneg %p74
        $region14: #{tpu_custom_call.1} parent=11 // pred_check_branch
          %224 = sbr.rel (%p222) target = $region16
        $region15: #{tpu_custom_call.1} parent=11 // pred_region
          _
        $region16: #{tpu_custom_call.1} parent=11 // pred_fallthru
          _
        // Predicated region
        $region17: #{tpu_custom_call.1} parent=11 // pred_check
          %p225 = pneg %p95
        $region18: #{tpu_custom_call.1} parent=11 // pred_check_branch
          %227 = sbr.rel (%p225) target = $region20
        $region19: #{tpu_custom_call.1} parent=11 // pred_region
          _
        $region20: #{tpu_custom_call.1} parent=11 // pred_fallthru
          _
        // Predicated region
        $region21: #{tpu_custom_call.1} parent=11 // pred_check
          %p228 = pneg %p116
        $region22: #{tpu_custom_call.1} parent=11 // pred_check_branch
          %230 = sbr.rel (%p228) target = $region24
        $region23: #{tpu_custom_call.1} parent=11 // pred_region
          _
        $region24: #{tpu_custom_call.1} parent=11 // pred_fallthru
          _
        // Predicated region
        $region25: #{tpu_custom_call.1} parent=11 // pred_check
          %p231 = pneg %p137
        $region26: #{tpu_custom_call.1} parent=11 // pred_check_branch
          %233 = sbr.rel (%p231) target = $region28
        $region27: #{tpu_custom_call.1} parent=11 // pred_region
          _
        $region28: #{tpu_custom_call.1} parent=11 // pred_fallthru
          _
        // Predicated region
        $region29: #{tpu_custom_call.1} parent=11 // pred_check
          %p234 = pneg %p158
        $region30: #{tpu_custom_call.1} parent=11 // pred_check_branch
          %236 = sbr.rel (%p234) target = $region32
        $region31: #{tpu_custom_call.1} parent=11 // pred_region
          _
        $region32: #{tpu_custom_call.1} parent=11 // pred_fallthru
          _
        // Predicated region
        $region33: #{tpu_custom_call.1} parent=11 // pred_check
          %p237 = pneg %p179
        $region34: #{tpu_custom_call.1} parent=11 // pred_check_branch
          %239 = sbr.rel (%p237) target = $region36
        $region35: #{tpu_custom_call.1} parent=11 // pred_region
          _
        $region36: #{tpu_custom_call.1} parent=11 // pred_fallthru
          _
      $region12: #{tpu_custom_call.1} parent=5 // pred_fallthru
        _
      %p240 = scmp.lt.s32.totalorder %s13, 4
      // Predicated region
      $region37: #{tpu_custom_call.1} parent=5 // pred_check
        %p241 = pneg %p240
      $region38: #{tpu_custom_call.1} parent=5 // pred_check_branch
        %243 = sbr.rel (%p241) target = $region40
      $region39: #{tpu_custom_call.1} parent=5 // pred_region
        // Predicated region
        $region41: #{tpu_custom_call.1} parent=39 // pred_check
          %p244 = pneg %p47
        $region42: #{tpu_custom_call.1} parent=39 // pred_check_branch
          %246 = sbr.rel (%p244) target = $region44
        $region43: #{tpu_custom_call.1} parent=39 // pred_region
          %s247 = sand.u32 %s37, 1
          %s248 = sand.u32 %s37, 1
          %s249 = smul.addr %s248, 128
          %s250 = scalar_lea.vmem [#allocation3], %s249
          %s251 = smul.u32 4, %s21
          %s252 = smul.addr %s20, 32
          %s253 = sadd.s32 %s251, %s252
          %s254 = smul.addr %s253, 8
          %s255 = scalar_lea.vmem %s0, %s254
          // Predicated region
          $region45: #{tpu_custom_call.1} parent=43 // pred_check
            _
          $region46: #{tpu_custom_call.1} parent=43 // pred_check_branch
            %257 = sbr.rel (0) target = $region48
          $region47: #{tpu_custom_call.1} parent=43 // pred_region
            // Predicated region
            $region49: #{tpu_custom_call.1} parent=47 // pred_check
              _
            $region50: #{tpu_custom_call.1} parent=47 // pred_check_branch
              %259 = sbr.rel (0) target = $region52
            $region51: #{tpu_custom_call.1} parent=47 // pred_region
              // Predicated region
              $region64: #{tpu_custom_call.1} parent=51 // pred_check
                _
              $region65: #{tpu_custom_call.1} parent=51 // pred_check_branch
                %304 = sbr.rel (0) target = $region67
              $region66: #{tpu_custom_call.1} parent=51 // pred_region
                loop: start=0, step=1, limit=1
                $region68: #{tpu_custom_call.1} parent=66 // loop_pre_header
                  _
                $region69: #{tpu_custom_call.1} parent=66 // loop_header
                  %s306 = sphi 0, %s310
                  %p307 = scmp.ge.s32.totalorder %s306, 1
                  %s311 = sphi %s255, %s255
                  %s312 = sphi %s250, %s250
                $region70: #{tpu_custom_call.1} parent=66 // loop_header_branch
                  %309 = sbr.rel (%p307) target = $region74
                $region71: #{tpu_custom_call.1} parent=66 // loop_body
                  %v313 = vld [vmem:[%s311] sm:$0xff]
                  %314 = vst [vmem:[%s312] sm:$0xff] %v313
                  %v315 = vld [vmem:[%s311 + $0x8] sm:$0xff]
                  %316 = vst [vmem:[%s312 + $0x8] sm:$0xff] %v315
                  %v317 = vld [vmem:[%s311 + $0x10] sm:$0xff]
                  %318 = vst [vmem:[%s312 + $0x10] sm:$0xff] %v317
                  %v319 = vld [vmem:[%s311 + $0x18] sm:$0xff]
                  %320 = vst [vmem:[%s312 + $0x18] sm:$0xff] %v319
                  %v321 = vld [vmem:[%s311 + $0x40] sm:$0xff]
                  %322 = vst [vmem:[%s312 + $0x20] sm:$0xff] %v321
                  %v323 = vld [vmem:[%s311 + $0x48] sm:$0xff]
                  %324 = vst [vmem:[%s312 + $0x28] sm:$0xff] %v323
                  %v325 = vld [vmem:[%s311 + $0x50] sm:$0xff]
                  %326 = vst [vmem:[%s312 + $0x30] sm:$0xff] %v325
                  %v327 = vld [vmem:[%s311 + $0x58] sm:$0xff]
                  %328 = vst [vmem:[%s312 + $0x38] sm:$0xff] %v327
                  %v329 = vld [vmem:[%s311 + $0x80] sm:$0xff]
                  %330 = vst [vmem:[%s312 + $0x40] sm:$0xff] %v329
                  %v331 = vld [vmem:[%s311 + $0x88] sm:$0xff]
                  %332 = vst [vmem:[%s312 + $0x48] sm:$0xff] %v331
                  %v333 = vld [vmem:[%s311 + $0x90] sm:$0xff]
                  %334 = vst [vmem:[%s312 + $0x50] sm:$0xff] %v333
                  %v335 = vld [vmem:[%s311 + $0x98] sm:$0xff]
                  %336 = vst [vmem:[%s312 + $0x58] sm:$0xff] %v335
                  %v337 = vld [vmem:[%s311 + $0xc0] sm:$0xff]
                  %338 = vst [vmem:[%s312 + $0x60] sm:$0xff] %v337
                  %v339 = vld [vmem:[%s311 + $0xc8] sm:$0xff]
                  %340 = vst [vmem:[%s312 + $0x68] sm:$0xff] %v339
                  %v341 = vld [vmem:[%s311 + $0xd0] sm:$0xff]
                  %342 = vst [vmem:[%s312 + $0x70] sm:$0xff] %v341
                  %v343 = vld [vmem:[%s311 + $0xd8] sm:$0xff]
                  %344 = vst [vmem:[%s312 + $0x78] sm:$0xff] %v343
                $region72: #{tpu_custom_call.1} parent=66 // loop_footer
                  %s310 = sadd.s32 1, %s306
                $region73: #{tpu_custom_call.1} parent=66 // loop_footer_branch
                  %305 = sbr.rel target = $region69
                $region74: #{tpu_custom_call.1} parent=66 // loop_exit
                  _
              $region67: #{tpu_custom_call.1} parent=51 // pred_fallthru
                _
              // Predicated region
              $region75: #{tpu_custom_call.1} parent=51 // pred_check
                _
              $region76: #{tpu_custom_call.1} parent=51 // pred_check_branch
                %346 = sbr.rel target = $region78
              $region77: #{tpu_custom_call.1} parent=51 // pred_region
                _
              $region78: #{tpu_custom_call.1} parent=51 // pred_fallthru
                _
            $region52: #{tpu_custom_call.1} parent=47 // pred_fallthru
              _
            // Predicated region
            $region53: #{tpu_custom_call.1} parent=47 // pred_check
              _
            $region54: #{tpu_custom_call.1} parent=47 // pred_check_branch
              %261 = sbr.rel target = $region56
            $region55: #{tpu_custom_call.1} parent=47 // pred_region
              loop: start=0, step=1, limit=1
              $region57: #{tpu_custom_call.1} parent=55 // loop_pre_header
                _
              $region58: #{tpu_custom_call.1} parent=55 // loop_header
                %s264 = sphi 0, %s268
                %p265 = scmp.ge.s32.totalorder %s264, 1
                %s269 = sphi %s255, %s255
                %s270 = sphi %s250, %s250
              $region59: #{tpu_custom_call.1} parent=55 // loop_header_branch
                %267 = sbr.rel (%p265) target = $region63
              $region60: #{tpu_custom_call.1} parent=55 // loop_body
                %v271 = vld [vmem:[%s269] sm:$0xff]
                %272 = vst [vmem:[%s270] sm:$0xff] %v271
                %v273 = vld [vmem:[%s269 + $0x8] sm:$0xff]
                %274 = vst [vmem:[%s270 + $0x8] sm:$0xff] %v273
                %v275 = vld [vmem:[%s269 + $0x10] sm:$0xff]
                %276 = vst [vmem:[%s270 + $0x10] sm:$0xff] %v275
                %v277 = vld [vmem:[%s269 + $0x18] sm:$0xff]
                %278 = vst [vmem:[%s270 + $0x18] sm:$0xff] %v277
                %v279 = vld [vmem:[%s269 + $0x40] sm:$0xff]
                %280 = vst [vmem:[%s270 + $0x20] sm:$0xff] %v279
                %v281 = vld [vmem:[%s269 + $0x48] sm:$0xff]
                %282 = vst [vmem:[%s270 + $0x28] sm:$0xff] %v281
                %v283 = vld [vmem:[%s269 + $0x50] sm:$0xff]
                %284 = vst [vmem:[%s270 + $0x30] sm:$0xff] %v283
                %v285 = vld [vmem:[%s269 + $0x58] sm:$0xff]
                %286 = vst [vmem:[%s270 + $0x38] sm:$0xff] %v285
                %v287 = vld [vmem:[%s269 + $0x80] sm:$0xff]
                %288 = vst [vmem:[%s270 + $0x40] sm:$0xff] %v287
                %v289 = vld [vmem:[%s269 + $0x88] sm:$0xff]
                %290 = vst [vmem:[%s270 + $0x48] sm:$0xff] %v289
                %v291 = vld [vmem:[%s269 + $0x90] sm:$0xff]
                %292 = vst [vmem:[%s270 + $0x50] sm:$0xff] %v291
                %v293 = vld [vmem:[%s269 + $0x98] sm:$0xff]
                %294 = vst [vmem:[%s270 + $0x58] sm:$0xff] %v293
                %v295 = vld [vmem:[%s269 + $0xc0] sm:$0xff]
                %296 = vst [vmem:[%s270 + $0x60] sm:$0xff] %v295
                %v297 = vld [vmem:[%s269 + $0xc8] sm:$0xff]
                %298 = vst [vmem:[%s270 + $0x68] sm:$0xff] %v297
                %v299 = vld [vmem:[%s269 + $0xd0] sm:$0xff]
                %300 = vst [vmem:[%s270 + $0x70] sm:$0xff] %v299
                %v301 = vld [vmem:[%s269 + $0xd8] sm:$0xff]
                %302 = vst [vmem:[%s270 + $0x78] sm:$0xff] %v301
              $region61: #{tpu_custom_call.1} parent=55 // loop_footer
                %s268 = sadd.s32 1, %s264
              $region62: #{tpu_custom_call.1} parent=55 // loop_footer_branch
                %263 = sbr.rel target = $region58
              $region63: #{tpu_custom_call.1} parent=55 // loop_exit
                _
            $region56: #{tpu_custom_call.1} parent=47 // pred_fallthru
              _
          $region48: #{tpu_custom_call.1} parent=43 // pred_fallthru
            _
          %347 = vnop
        $region44: #{tpu_custom_call.1} parent=39 // pred_fallthru
          _
      $region40: #{tpu_custom_call.1} parent=5 // pred_fallthru
        _
      %p348 = scmp.le.s32.totalorder 1, %s13
      %p349 = scmp.lt.s32.totalorder %s13, 5
      %p350 = pnand %p348, %p349
      %p351 = pneg %p350
      // Predicated region
      $region79: #{tpu_custom_call.1} parent=5 // pred_check
        _
      $region80: #{tpu_custom_call.1} parent=5 // pred_check_branch
        %353 = sbr.rel (%p350) target = $region82
      $region81: #{tpu_custom_call.1} parent=5 // pred_region
        %s354 = ssub.s32 %s13, 1
        %s355 = sand.u32 %s40, 1
        %s356 = sand.u32 %s40, 1
        %s357 = smul.addr %s356, 128
        %s358 = scalar_lea.vmem [#allocation3], %s357
        // Predicated region
        $region83: #{tpu_custom_call.1} parent=81 // pred_check
          %p359 = pneg %p53
        $region84: #{tpu_custom_call.1} parent=81 // pred_check_branch
          %361 = sbr.rel (%p359) target = $region86
        $region85: #{tpu_custom_call.1} parent=81 // pred_region
          _
        $region86: #{tpu_custom_call.1} parent=81 // pred_fallthru
          _
        %s362 = sand.u32 %s40, 1
        %s363 = sand.u32 %s40, 1
        %s364 = smul.addr %s363, 128
        %s365 = scalar_lea.vmem [#allocation3], %s364
        %p366 = pneg %p53
        %p367 = pneg %p50
        %p368 = pneg %p74
        %p369 = pneg %p71
        %p370 = pneg %p95
        %p371 = pneg %p92
        %p372 = pneg %p116
        %p373 = pneg %p113
        %p374 = pneg %p137
        %p375 = pneg %p134
        %p376 = pneg %p158
        %p377 = pneg %p155
        %p378 = pneg %p179
        %p379 = pneg %p176
        %p380 = pneg %p207
        %p381 = pneg %p204
        %s382 = smul.u32 4, %s23
        %p383 = scmp.lt.s32.totalorder %s22, 1
        %s384 = scalar_select %p383, %s22, 1
        %p385 = scmp.lt.s32.totalorder %s382, 7
        %s386 = scalar_select %p385, %s382, 7
        %s387 = smul.addr %s384, 8
        %s388 = sadd.s32 %s386, %s387
        %s389 = smul.addr %s388, 8
        %s390 = scalar_lea.vmem %s7, %s389
        %s391 = smul.u32 4, %s23
        %s392 = smul.u32 4, %s23
        %p393 = scmp.lt.s32.totalorder %s22, 1
        %s394 = scalar_select %p393, %s22, 1
        %p395 = scmp.lt.s32.totalorder %s392, 7
        %s396 = scalar_select %p395, %s392, 7
        %s397 = smul.addr %s394, 8
        %s398 = sadd.s32 %s396, %s397
        %s399 = smul.addr %s398, 8
        %s400 = scalar_lea.vmem %s7, %s399
        %s401 = smul.u32 4, %s23
        %p402 = scmp.eq.s32.totalorder %s23, 0
        // Predicated region
        $region87: #{tpu_custom_call.1} parent=81 // pred_check
          %p403 = pneg %p402
        $region88: #{tpu_custom_call.1} parent=81 // pred_check_branch
          %405 = sbr.rel (%p403) target = $region90
        $region89: #{tpu_custom_call.1} parent=81 // pred_region
          %s406 = scalar_lea.vmem [#allocation2], 160
          %vm407 = vcmask 261120
          %408 = vst.msk [vmem:[%s406] sm:$0xff] %vm407, 0.0
          %409 = vst.msk [vmem:[%s406 + $0x8] sm:$0xff] %vm407, 0.0
          %s410 = scalar_lea.vmem [#allocation2], 240
          %411 = vst.msk [vmem:[%s410] sm:$0xff] %vm407, 0.0
          %412 = vst.msk [vmem:[%s410 + $0x8] sm:$0xff] %vm407, 0.0
          %s413 = scalar_lea.vmem [#allocation2], 80
          %vm414 = vcmask 253952
          %415 = vst.msk [vmem:[%s413] sm:$0x1] %vm414, 0.0
          %416 = vst.msk [vmem:[%s413 + $0x10] sm:$0x1] %vm414, 0.0
          %417 = vst.msk [vmem:[%s413 + $0x20] sm:$0x1] %vm414, 0.0
          %418 = vst.msk [vmem:[%s413 + $0x30] sm:$0x1] %vm414, 0.0
          %419 = vst.msk [vmem:[%s413 + $0x40] sm:$0x1] %vm414, 0.0
          %420 = vst.msk [vmem:[%s410] sm:$0x1] %vm414, 0.0
          %421 = vst.msk [vmem:[%s410 + $0x10] sm:$0x1] %vm414, 0.0
          %422 = vst.msk [vmem:[%s410 + $0x20] sm:$0x1] %vm414, 0.0
          %423 = vst.msk [vmem:[%s410 + $0x30] sm:$0x1] %vm414, 0.0
          %424 = vst.msk [vmem:[%s410 + $0x40] sm:$0x1] %vm414, 0.0
        $region90: #{tpu_custom_call.1} parent=81 // pred_fallthru
          _
        %p425 = scmp.gt.s32.totalorder %s23, 0
        // Predicated region
        $region91: #{tpu_custom_call.1} parent=81 // pred_check
          %p426 = pneg %p425
        $region92: #{tpu_custom_call.1} parent=81 // pred_check_branch
          %428 = sbr.rel (%p426) target = $region94
        $region93: #{tpu_custom_call.1} parent=81 // pred_region
          %s429 = scalar_lea.vmem [#allocation2], 224
          %v430 = vld [vmem:[%s429] sm:$0xff]
          %v431 = vld [vmem:[%s429 + $0x8] sm:$0xff]
          %s432 = scalar_lea.vmem [#allocation2], 160
          %vm433 = vcmask 261120
          %434 = vst.msk [vmem:[%s432] sm:$0xff] %vm433, %v430
          %435 = vst.msk [vmem:[%s432 + $0x8] sm:$0xff] %vm433, %v431
          %s436 = scalar_lea.vmem [#allocation2], 304
          %v437 = vld [vmem:[%s436] sm:$0xff]
          %v438 = vld [vmem:[%s436 + $0x8] sm:$0xff]
          %s439 = scalar_lea.vmem [#allocation2], 240
          %440 = vst.msk [vmem:[%s439] sm:$0xff] %vm433, %v437
          %441 = vst.msk [vmem:[%s439 + $0x8] sm:$0xff] %vm433, %v438
        $region94: #{tpu_custom_call.1} parent=81 // pred_fallthru
          _
        %v442 = vld [vmem:[%s358] sm:$0xff]
        %v443 = vld [vmem:[%s358 + $0x8] sm:$0xff]
        %v444 = vld [vmem:[%s358 + $0x10] sm:$0xff]
        %v445 = vld [vmem:[%s358 + $0x18] sm:$0xff]
        %v446 = vld [vmem:[%s358 + $0x20] sm:$0xff]
        %v447 = vld [vmem:[%s358 + $0x28] sm:$0xff]
        %v448 = vld [vmem:[%s358 + $0x30] sm:$0xff]
        %v449 = vld [vmem:[%s358 + $0x38] sm:$0xff]
        %v450 = vld [vmem:[%s358 + $0x40] sm:$0xff]
        %v451 = vld [vmem:[%s358 + $0x48] sm:$0xff]
        %v452 = vld [vmem:[%s358 + $0x50] sm:$0xff]
        %v453 = vld [vmem:[%s358 + $0x58] sm:$0xff]
        %v454 = vld [vmem:[%s358 + $0x60] sm:$0xff]
        %v455 = vld [vmem:[%s358 + $0x68] sm:$0xff]
        %v456 = vld [vmem:[%s358 + $0x70] sm:$0xff]
        %v457 = vld [vmem:[%s358 + $0x78] sm:$0xff]
        %v458 = vld [vmem:[%s1] sm:$0xff]
        %v459 = vld [vmem:[%s2] sm:$0x1]
        %v461 = vlaneseq
        %v462 = vshrl.u32 %v461, 7
        %v463 = vsub.s32 0, %v462
        %v464 = vrot.slane %v459, %v463
        %vm466 = vcmask 64512
        %v468 = vsel %vm466, %v442, 0
        %v471 = vsel %vm466, %v443, 0
        %v474 = vsel %vm466, %v444, 0
        %v477 = vsel %vm466, %v445, 0
        %v480 = vsel %vm466, %v446, 0
        %v483 = vsel %vm466, %v447, 0
        %v486 = vsel %vm466, %v448, 0
        %v489 = vsel %vm466, %v449, 0
        %v492 = vsel %vm466, %v450, 0
        %v495 = vsel %vm466, %v451, 0
        %v498 = vsel %vm466, %v452, 0
        %v501 = vsel %vm466, %v453, 0
        %v504 = vsel %vm466, %v454, 0
        %v507 = vsel %vm466, %v455, 0
        %v510 = vsel %vm466, %v456, 0
        %v513 = vsel %vm466, %v457, 0
        %515 = vmatprep.subr.mxu0 0.0
        %516 = vmatpush1.msra.mxu0 %v458
        %517 = vmatprep.subr.mxu0 0.0
        %518 = vmatpush1.msra.mxu0 0.0
        %519 = vmatprep.subr.mxu0 0.0
        %520 = vmatpush1.msra.mxu0 0.0
        %521 = vmatprep.subr.mxu0 0.0
        %522 = vmatpush1.msra.mxu0 0.0
        %523 = vmatprep.subr.mxu0 0.0
        %524 = vmatpush1.msra.mxu0 0.0
        %525 = vmatprep.subr.mxu0 0.0
        %526 = vmatpush1.msra.mxu0 0.0
        %527 = vmatprep.subr.mxu0 0.0
        %528 = vmatpush1.msra.mxu0 0.0
        %529 = vmatprep.subr.mxu0 0.0
        %530 = vmatpush1.msra.mxu0 0.0
        %531 = vmatprep.subr.mxu0 0.0
        %532 = vmatpush1.msra.mxu0 0.0
        %533 = vmatprep.subr.mxu0 0.0
        %534 = vmatpush1.msra.mxu0 0.0
        %535 = vmatprep.subr.mxu0 0.0
        %536 = vmatpush1.msra.mxu0 0.0
        %537 = vmatprep.subr.mxu0 0.0
        %538 = vmatpush1.msra.mxu0 0.0
        %539 = vmatprep.subr.mxu0 0.0
        %540 = vmatpush1.msra.mxu0 0.0
        %541 = vmatprep.subr.mxu0 0.0
        %542 = vmatpush1.msra.mxu0 0.0
        %543 = vmatprep.subr.mxu0 0.0
        %544 = vmatpush1.msra.mxu0 0.0
        %545 = vmatprep.subr.mxu0 0.0
        %546 = vmatpush1.msra.mxu0 0.0
        %547 = vmatprep.subr.mxu0 0.0
        %548 = vmatpush1.msra.mxu0 0.0
        %549 = vmatprep.subr.mxu0 0.0
        %550 = vmatpush1.msra.mxu0 0.0
        %551 = vmatprep.subr.mxu0 0.0
        %552 = vmatpush1.msra.mxu0 0.0
        %553 = vmatprep.subr.mxu0 0.0
        %554 = vmatpush1.msra.mxu0 0.0
        %555 = vmatprep.subr.mxu0 0.0
        %556 = vmatpush1.msra.mxu0 0.0
        %557 = vmatprep.subr.mxu0 0.0
        %558 = vmatpush1.msra.mxu0 0.0
        %559 = vmatprep.subr.mxu0 0.0
        %560 = vmatpush1.msra.mxu0 0.0
        %561 = vmatprep.subr.mxu0 0.0
        %562 = vmatpush1.msra.mxu0 0.0
        %563 = vmatprep.subr.mxu0 0.0
        %564 = vmatpush1.msra.mxu0 0.0
        %565 = vmatprep.subr.mxu0 0.0
        %566 = vmatpush1.msra.mxu0 0.0
        %567 = vmatprep.subr.mxu0 0.0
        %568 = vmatpush1.msra.mxu0 0.0
        %569 = vmatprep.subr.mxu0 0.0
        %570 = vmatpush1.msra.mxu0 0.0
        %571 = vmatprep.subr.mxu0 0.0
        %572 = vmatpush1.msra.mxu0 0.0
        %573 = vmatprep.subr.mxu0 0.0
        %574 = vmatpush1.msra.mxu0 0.0
        %575 = vmatprep.subr.mxu0 0.0
        %576 = vmatpush1.msra.mxu0 0.0
        %577 = vmatprep.subr.mxu0 0.0
        %578 = vmatpush1.msra.mxu0 0.0
        %579 = vmatprep.mubr.f32.mxu0 0.0
        %580 = vmatmul.mubr.f32.gmra.mrb[0].mxu0 %v468
        %v581 = vpop.f32.mrb[0].mxu0
        %v582 = vadd.f32 %v464, %v581
        %v583 = vpop.f32.mrb[0].mxu0
        %584 = vmatprep.mubr.f32.mxu0 0.0
        %585 = vmatmul.mubr.f32.gmra.mrb[0].mxu0 %v471
        %v586 = vpop.f32.mrb[0].mxu0
        %v587 = vadd.f32 %v464, %v586
        %v588 = vpop.f32.mrb[0].mxu0
        %589 = vmatprep.mubr.f32.mxu0 0.0
        %590 = vmatmul.mubr.f32.gmra.mrb[0].mxu0 %v474
        %v591 = vpop.f32.mrb[0].mxu0
        %v592 = vadd.f32 %v464, %v591
        %v593 = vpop.f32.mrb[0].mxu0
        %594 = vmatprep.mubr.f32.mxu0 0.0
        %595 = vmatmul.mubr.f32.gmra.mrb[0].mxu0 %v477
        %v596 = vpop.f32.mrb[0].mxu0
        %v597 = vadd.f32 %v464, %v596
        %v598 = vpop.f32.mrb[0].mxu0
        %599 = vmatprep.mubr.f32.mxu0 0.0
        %600 = vmatmul.mubr.f32.gmra.mrb[0].mxu0 %v480
        %v601 = vpop.f32.mrb[0].mxu0
        %v602 = vadd.f32 %v464, %v601
        %v603 = vpop.f32.mrb[0].mxu0
        %604 = vmatprep.mubr.f32.mxu0 0.0
        %605 = vmatmul.mubr.f32.gmra.mrb[0].mxu0 %v483
        %v606 = vpop.f32.mrb[0].mxu0
        %v607 = vadd.f32 %v464, %v606
        %v608 = vpop.f32.mrb[0].mxu0
        %609 = vmatprep.mubr.f32.mxu0 0.0
        %610 = vmatmul.mubr.f32.gmra.mrb[0].mxu0 %v486
        %v611 = vpop.f32.mrb[0].mxu0
        %v612 = vadd.f32 %v464, %v611
        %v613 = vpop.f32.mrb[0].mxu0
        %614 = vmatprep.mubr.f32.mxu0 0.0
        %615 = vmatmul.mubr.f32.gmra.mrb[0].mxu0 %v489
        %v616 = vpop.f32.mrb[0].mxu0
        %v617 = vadd.f32 %v464, %v616
        %v618 = vpop.f32.mrb[0].mxu0
        %619 = vmatprep.mubr.f32.mxu0 0.0
        %620 = vmatmul.mubr.f32.gmra.mrb[0].mxu0 %v492
        %v621 = vpop.f32.mrb[0].mxu0
        %v622 = vadd.f32 %v464, %v621
        %v623 = vpop.f32.mrb[0].mxu0
        %624 = vmatprep.mubr.f32.mxu0 0.0
        %625 = vmatmul.mubr.f32.gmra.mrb[0].mxu0 %v495
        %v626 = vpop.f32.mrb[0].mxu0
        %v627 = vadd.f32 %v464, %v626
        %v628 = vpop.f32.mrb[0].mxu0
        %629 = vmatprep.mubr.f32.mxu0 0.0
        %630 = vmatmul.mubr.f32.gmra.mrb[0].mxu0 %v498
        %v631 = vpop.f32.mrb[0].mxu0
        %v632 = vadd.f32 %v464, %v631
        %v633 = vpop.f32.mrb[0].mxu0
        %634 = vmatprep.mubr.f32.mxu0 0.0
        %635 = vmatmul.mubr.f32.gmra.mrb[0].mxu0 %v501
        %v636 = vpop.f32.mrb[0].mxu0
        %v637 = vadd.f32 %v464, %v636
        %v638 = vpop.f32.mrb[0].mxu0
        %639 = vmatprep.mubr.f32.mxu0 0.0
        %640 = vmatmul.mubr.f32.gmra.mrb[0].mxu0 %v504
        %v641 = vpop.f32.mrb[0].mxu0
        %v642 = vadd.f32 %v464, %v641
        %v643 = vpop.f32.mrb[0].mxu0
        %644 = vmatprep.mubr.f32.mxu0 0.0
        %645 = vmatmul.mubr.f32.gmra.mrb[0].mxu0 %v507
        %v646 = vpop.f32.mrb[0].mxu0
        %v647 = vadd.f32 %v464, %v646
        %v648 = vpop.f32.mrb[0].mxu0
        %649 = vmatprep.mubr.f32.mxu0 0.0
        %650 = vmatmul.mubr.f32.gmra.mrb[0].mxu0 %v510
        %v651 = vpop.f32.mrb[0].mxu0
        %v652 = vadd.f32 %v464, %v651
        %v653 = vpop.f32.mrb[0].mxu0
        %654 = vmatprep.mubr.f32.mxu0 0.0
        %655 = vmatmul.mubr.f32.gmra.mrb[0].mxu0 %v513
        %v656 = vpop.f32.mrb[0].mxu0
        %v657 = vadd.f32 %v464, %v656
        %v658 = vpop.f32.mrb[0].mxu0
        %659 = vdwg.mxu0
        %v660 = vmul.f32 %v582, %v582
        %v661 = vmul.f32 %v587, %v587
        %v662 = vmul.f32 %v592, %v592
        %v663 = vmul.f32 %v597, %v597
        %v664 = vmul.f32 %v602, %v602
        %v665 = vmul.f32 %v607, %v607
        %v666 = vmul.f32 %v612, %v612
        %v667 = vmul.f32 %v617, %v617
        %v668 = vmul.f32 %v622, %v622
        %v669 = vmul.f32 %v627, %v627
        %v670 = vmul.f32 %v632, %v632
        %v671 = vmul.f32 %v637, %v637
        %v672 = vmul.f32 %v642, %v642
        %v673 = vmul.f32 %v647, %v647
        %v674 = vmul.f32 %v652, %v652
        %v675 = vmul.f32 %v657, %v657
        %v676 = vmul.f32 %v582, %v660
        %v677 = vmul.f32 %v587, %v661
        %v678 = vmul.f32 %v592, %v662
        %v679 = vmul.f32 %v597, %v663
        %v680 = vmul.f32 %v602, %v664
        %v681 = vmul.f32 %v607, %v665
        %v682 = vmul.f32 %v612, %v666
        %v683 = vmul.f32 %v617, %v667
        %v684 = vmul.f32 %v622, %v668
        %v685 = vmul.f32 %v627, %v669
        %v686 = vmul.f32 %v632, %v670
        %v687 = vmul.f32 %v637, %v671
        %v688 = vmul.f32 %v642, %v672
        %v689 = vmul.f32 %v647, %v673
        %v690 = vmul.f32 %v652, %v674
        %v691 = vmul.f32 %v657, %v675
        %v692 = vmul.f32 %v676, 0.044715
        %v693 = vmul.f32 %v677, 0.044715
        %v694 = vmul.f32 %v678, 0.044715
        %v695 = vmul.f32 %v679, 0.044715
        %v696 = vmul.f32 %v680, 0.044715
        %v697 = vmul.f32 %v681, 0.044715
        %v698 = vmul.f32 %v682, 0.044715
        %v699 = vmul.f32 %v683, 0.044715
        %v700 = vmul.f32 %v684, 0.044715
        %v701 = vmul.f32 %v685, 0.044715
        %v702 = vmul.f32 %v686, 0.044715
        %v703 = vmul.f32 %v687, 0.044715
        %v704 = vmul.f32 %v688, 0.044715
        %v705 = vmul.f32 %v689, 0.044715
        %v706 = vmul.f32 %v690, 0.044715
        %v707 = vmul.f32 %v691, 0.044715
        %v708 = vadd.f32 %v582, %v692
        %v709 = vadd.f32 %v587, %v693
        %v710 = vadd.f32 %v592, %v694
        %v711 = vadd.f32 %v597, %v695
        %v712 = vadd.f32 %v602, %v696
        %v713 = vadd.f32 %v607, %v697
        %v714 = vadd.f32 %v612, %v698
        %v715 = vadd.f32 %v617, %v699
        %v716 = vadd.f32 %v622, %v700
        %v717 = vadd.f32 %v627, %v701
        %v718 = vadd.f32 %v632, %v702
        %v719 = vadd.f32 %v637, %v703
        %v720 = vadd.f32 %v642, %v704
        %v721 = vadd.f32 %v647, %v705
        %v722 = vadd.f32 %v652, %v706
        %v723 = vadd.f32 %v657, %v707
        %v724 = vmul.f32 %v708, 0.7978846
        %v725 = vmul.f32 %v709, 0.7978846
        %v726 = vmul.f32 %v710, 0.7978846
        %v727 = vmul.f32 %v711, 0.7978846
        %v728 = vmul.f32 %v712, 0.7978846
        %v729 = vmul.f32 %v713, 0.7978846
        %v730 = vmul.f32 %v714, 0.7978846
        %v731 = vmul.f32 %v715, 0.7978846
        %v732 = vmul.f32 %v716, 0.7978846
        %v733 = vmul.f32 %v717, 0.7978846
        %v734 = vmul.f32 %v718, 0.7978846
        %v735 = vmul.f32 %v719, 0.7978846
        %v736 = vmul.f32 %v720, 0.7978846
        %v737 = vmul.f32 %v721, 0.7978846
        %v738 = vmul.f32 %v722, 0.7978846
        %v739 = vmul.f32 %v723, 0.7978846
        %v740 = vtanh.pop %v724
        %v741 = vtanh.pop %v725
        %v742 = vtanh.pop %v726
        %v743 = vtanh.pop %v727
        %v744 = vtanh.pop %v728
        %v745 = vtanh.pop %v729
        %v746 = vtanh.pop %v730
        %v747 = vtanh.pop %v731
        %v748 = vtanh.pop %v732
        %v749 = vtanh.pop %v733
        %v750 = vtanh.pop %v734
        %v751 = vtanh.pop %v735
        %v752 = vtanh.pop %v736
        %v753 = vtanh.pop %v737
        %v754 = vtanh.pop %v738
        %v755 = vtanh.pop %v739
        %v756 = vadd.f32 %v740, 1.0
        %v757 = vadd.f32 %v741, 1.0
        %v758 = vadd.f32 %v742, 1.0
        %v759 = vadd.f32 %v743, 1.0
        %v760 = vadd.f32 %v744, 1.0
        %v761 = vadd.f32 %v745, 1.0
        %v762 = vadd.f32 %v746, 1.0
        %v763 = vadd.f32 %v747, 1.0
        %v764 = vadd.f32 %v748, 1.0
        %v765 = vadd.f32 %v749, 1.0
        %v766 = vadd.f32 %v750, 1.0
        %v767 = vadd.f32 %v751, 1.0
        %v768 = vadd.f32 %v752, 1.0
        %v769 = vadd.f32 %v753, 1.0
        %v770 = vadd.f32 %v754, 1.0
        %v771 = vadd.f32 %v755, 1.0
        %v772 = vmul.f32 %v756, 0.5
        %v773 = vmul.f32 %v757, 0.5
        %v774 = vmul.f32 %v758, 0.5
        %v775 = vmul.f32 %v759, 0.5
        %v776 = vmul.f32 %v760, 0.5
        %v777 = vmul.f32 %v761, 0.5
        %v778 = vmul.f32 %v762, 0.5
        %v779 = vmul.f32 %v763, 0.5
        %v780 = vmul.f32 %v764, 0.5
        %v781 = vmul.f32 %v765, 0.5
        %v782 = vmul.f32 %v766, 0.5
        %v783 = vmul.f32 %v767, 0.5
        %v784 = vmul.f32 %v768, 0.5
        %v785 = vmul.f32 %v769, 0.5
        %v786 = vmul.f32 %v770, 0.5
        %v787 = vmul.f32 %v771, 0.5
        %v788 = vmul.f32 %v582, %v772
        %v789 = vmul.f32 %v587, %v773
        %v790 = vmul.f32 %v592, %v774
        %v791 = vmul.f32 %v597, %v775
        %v792 = vmul.f32 %v602, %v776
        %v793 = vmul.f32 %v607, %v777
        %v794 = vmul.f32 %v612, %v778
        %v795 = vmul.f32 %v617, %v779
        %v796 = vmul.f32 %v622, %v780
        %v797 = vmul.f32 %v627, %v781
        %v798 = vmul.f32 %v632, %v782
        %v799 = vmul.f32 %v637, %v783
        %v800 = vmul.f32 %v642, %v784
        %v801 = vmul.f32 %v647, %v785
        %v802 = vmul.f32 %v652, %v786
        %v803 = vmul.f32 %v657, %v787
        %s804 = scalar_lea.vmem [#allocation2], 16
        %vm805 = vcmask 261120
        %806 = vst.msk [vmem:[%s804] sm:$0xff] %vm805, %v788
        %807 = vst.msk [vmem:[%s804 + $0x10] sm:$0xff] %vm805, %v789
        %808 = vst.msk [vmem:[%s804 + $0x20] sm:$0xff] %vm805, %v790
        %809 = vst.msk [vmem:[%s804 + $0x30] sm:$0xff] %vm805, %v791
        %s810 = scalar_lea.vmem [#allocation2], 96
        %811 = vst.msk [vmem:[%s810 + $0x1] sm:$0xff] %vm805, %v792
        %812 = vst.msk [vmem:[%s810 + $0x11] sm:$0xff] %vm805, %v793
        %813 = vst.msk [vmem:[%s810 + $0x21] sm:$0xff] %vm805, %v794
        %814 = vst.msk [vmem:[%s810 + $0x31] sm:$0xff] %vm805, %v795
        %s815 = scalar_lea.vmem [#allocation2], 176
        %816 = vst.msk [vmem:[%s815] sm:$0xff] %vm805, %v796
        %817 = vst.msk [vmem:[%s815 + $0x10] sm:$0xff] %vm805, %v797
        %818 = vst.msk [vmem:[%s815 + $0x20] sm:$0xff] %vm805, %v798
        %819 = vst.msk [vmem:[%s815 + $0x30] sm:$0xff] %vm805, %v799
        %s820 = scalar_lea.vmem [#allocation2], 256
        %821 = vst.msk [vmem:[%s820 + $0x1] sm:$0xff] %vm805, %v800
        %822 = vst.msk [vmem:[%s820 + $0x11] sm:$0xff] %vm805, %v801
        %823 = vst.msk [vmem:[%s820 + $0x21] sm:$0xff] %vm805, %v802
        %824 = vst.msk [vmem:[%s820 + $0x31] sm:$0xff] %vm805, %v803
        %v825 = vld [vmem:[%s3] sm:$0x7]
        %v826 = vld [vmem:[%s3 + $0x4] sm:$0x7]
        %v827 = vld [vmem:[%s3 + $0x8] sm:$0x7]
        %s828 = scalar_lea.vmem [#allocation2], 240
        %v829 = vld [vmem:[%s828] sm:$0xff]
        %v830 = vld [vmem:[%s828 + $0x10] sm:$0xff]
        %v831 = vld [vmem:[%s828 + $0x20] sm:$0xff]
        %v832 = vld [vmem:[%s828 + $0x30] sm:$0xff]
        %v833 = vlaneseq
        %v834 = vshrl.u32 %v833, 7
        %v835 = vsub.s32 0, %v834
        %v836 = vrot.slane %v825, %v835
        %v837 = vmul.f32 %v829, %v836
        %v838 = vmul.f32 %v830, %v836
        %v839 = vmul.f32 %v831, %v836
        %v840 = vmul.f32 %v832, %v836
        %s841 = scalar_lea.vmem [#allocation2], 160
        %v842 = vld [vmem:[%s841] sm:$0xff]
        %v843 = vld [vmem:[%s841 + $0x10] sm:$0xff]
        %v844 = vld [vmem:[%s841 + $0x20] sm:$0xff]
        %v845 = vld [vmem:[%s841 + $0x30] sm:$0xff]
        %v846 = vlaneseq
        %v847 = vshrl.u32 %v846, 7
        %v848 = vsub.s32 1, %v847
        %v849 = vrot.slane %v825, %v848
        %v850 = vmul.f32 %v842, %v849
        %v851 = vmul.f32 %v843, %v849
        %v852 = vmul.f32 %v844, %v849
        %v853 = vmul.f32 %v845, %v849
        %v854 = vadd.f32 %v837, %v850
        %v855 = vadd.f32 %v838, %v851
        %v856 = vadd.f32 %v839, %v852
        %v857 = vadd.f32 %v840, %v853
        %v858 = vld [vmem:[%s828 + $0x1] sm:$0xff]
        %v859 = vld [vmem:[%s828 + $0x11] sm:$0xff]
        %v860 = vld [vmem:[%s828 + $0x21] sm:$0xff]
        %v861 = vld [vmem:[%s828 + $0x31] sm:$0xff]
        %v862 = vlaneseq
        %v863 = vshrl.u32 %v862, 7
        %v864 = vsub.s32 2, %v863
        %v865 = vrot.slane %v825, %v864
        %v866 = vmul.f32 %v858, %v865
        %v867 = vmul.f32 %v859, %v865
        %v868 = vmul.f32 %v860, %v865
        %v869 = vmul.f32 %v861, %v865
        %v870 = vadd.f32 %v854, %v866
        %v871 = vadd.f32 %v855, %v867
        %v872 = vadd.f32 %v856, %v868
        %v873 = vadd.f32 %v857, %v869
        %v874 = vld [vmem:[%s810] sm:$0xff]
        %v875 = vld [vmem:[%s810 + $0x10] sm:$0xff]
        %v876 = vld [vmem:[%s810 + $0x20] sm:$0xff]
        %v877 = vld [vmem:[%s810 + $0x30] sm:$0xff]
        %v878 = vlaneseq
        %v879 = vshrl.u32 %v878, 7
        %v880 = vsub.s32 0, %v879
        %v881 = vrot.slane %v826, %v880
        %v882 = vmul.f32 %v874, %v881
        %v883 = vmul.f32 %v875, %v881
        %v884 = vmul.f32 %v876, %v881
        %v885 = vmul.f32 %v877, %v881
        %v886 = vadd.f32 %v870, %v882
        %v887 = vadd.f32 %v871, %v883
        %v888 = vadd.f32 %v872, %v884
        %v889 = vadd.f32 %v873, %v885
        %v890 = vld [vmem:[%s804] sm:$0xff]
        %v891 = vld [vmem:[%s804 + $0x10] sm:$0xff]
        %v892 = vld [vmem:[%s804 + $0x20] sm:$0xff]
        %v893 = vld [vmem:[%s804 + $0x30] sm:$0xff]
        %v894 = vlaneseq
        %v895 = vshrl.u32 %v894, 7
        %v896 = vsub.s32 1, %v895
        %v897 = vrot.slane %v826, %v896
        %v898 = vmul.f32 %v890, %v897
        %v899 = vmul.f32 %v891, %v897
        %v900 = vmul.f32 %v892, %v897
        %v901 = vmul.f32 %v893, %v897
        %v902 = vadd.f32 %v886, %v898
        %v903 = vadd.f32 %v887, %v899
        %v904 = vadd.f32 %v888, %v900
        %v905 = vadd.f32 %v889, %v901
        %v906 = vld [vmem:[%s810 + $0x1] sm:$0xff]
        %v907 = vld [vmem:[%s810 + $0x11] sm:$0xff]
        %v908 = vld [vmem:[%s810 + $0x21] sm:$0xff]
        %v909 = vld [vmem:[%s810 + $0x31] sm:$0xff]
        %v910 = vlaneseq
        %v911 = vshrl.u32 %v910, 7
        %v912 = vsub.s32 2, %v911
        %v913 = vrot.slane %v826, %v912
        %v914 = vmul.f32 %v906, %v913
        %v915 = vmul.f32 %v907, %v913
        %v916 = vmul.f32 %v908, %v913
        %v917 = vmul.f32 %v909, %v913
        %v918 = vadd.f32 %v902, %v914
        %v919 = vadd.f32 %v903, %v915
        %v920 = vadd.f32 %v904, %v916
        %v921 = vadd.f32 %v905, %v917
        %v922 = vld [vmem:[%s820] sm:$0xff]
        %v923 = vld [vmem:[%s820 + $0x10] sm:$0xff]
        %v924 = vld [vmem:[%s820 + $0x20] sm:$0xff]
        %v925 = vld [vmem:[%s820 + $0x30] sm:$0xff]
        %v926 = vlaneseq
        %v927 = vshrl.u32 %v926, 7
        %v928 = vsub.s32 0, %v927
        %v929 = vrot.slane %v827, %v928
        %v930 = vmul.f32 %v922, %v929
        %v931 = vmul.f32 %v923, %v929
        %v932 = vmul.f32 %v924, %v929
        %v933 = vmul.f32 %v925, %v929
        %v934 = vadd.f32 %v918, %v930
        %v935 = vadd.f32 %v919, %v931
        %v936 = vadd.f32 %v920, %v932
        %v937 = vadd.f32 %v921, %v933
        %v938 = vld [vmem:[%s815] sm:$0xff]
        %v939 = vld [vmem:[%s815 + $0x10] sm:$0xff]
        %v940 = vld [vmem:[%s815 + $0x20] sm:$0xff]
        %v941 = vld [vmem:[%s815 + $0x30] sm:$0xff]
        %v942 = vlaneseq
        %v943 = vshrl.u32 %v942, 7
        %v944 = vsub.s32 1, %v943
        %v945 = vrot.slane %v827, %v944
        %v946 = vmul.f32 %v938, %v945
        %v947 = vmul.f32 %v939, %v945
        %v948 = vmul.f32 %v940, %v945
        %v949 = vmul.f32 %v941, %v945
        %v950 = vadd.f32 %v934, %v946
        %v951 = vadd.f32 %v935, %v947
        %v952 = vadd.f32 %v936, %v948
        %v953 = vadd.f32 %v937, %v949
        %v954 = vld [vmem:[%s820 + $0x1] sm:$0xff]
        %v955 = vld [vmem:[%s820 + $0x11] sm:$0xff]
        %v956 = vld [vmem:[%s820 + $0x21] sm:$0xff]
        %v957 = vld [vmem:[%s820 + $0x31] sm:$0xff]
        %v958 = vlaneseq
        %v959 = vshrl.u32 %v958, 7
        %v960 = vsub.s32 2, %v959
        %v961 = vrot.slane %v827, %v960
        %v962 = vmul.f32 %v954, %v961
        %v963 = vmul.f32 %v955, %v961
        %v964 = vmul.f32 %v956, %v961
        %v965 = vmul.f32 %v957, %v961
        %v966 = vadd.f32 %v950, %v962
        %v967 = vadd.f32 %v951, %v963
        %v968 = vadd.f32 %v952, %v964
        %v969 = vadd.f32 %v953, %v965
        %v970 = vld [vmem:[%s4] sm:$0x1]
        %v972 = vlaneseq
        %v973 = vshrl.u32 %v972, 7
        %v974 = vsub.s32 0, %v973
        %v975 = vrot.slane %v970, %v974
        %v977 = vadd.f32 %v966, %v975
        %v978 = vadd.f32 %v967, %v975
        %v979 = vadd.f32 %v968, %v975
        %v980 = vadd.f32 %v969, %v975
        %v981 = vmul.f32 %v977, %v977
        %v982 = vmul.f32 %v978, %v978
        %v983 = vmul.f32 %v979, %v979
        %v984 = vmul.f32 %v980, %v980
        %v985 = vmul.f32 %v977, %v981
        %v986 = vmul.f32 %v978, %v982
        %v987 = vmul.f32 %v979, %v983
        %v988 = vmul.f32 %v980, %v984
        %v989 = vmul.f32 %v985, 0.044715
        %v990 = vmul.f32 %v986, 0.044715
        %v991 = vmul.f32 %v987, 0.044715
        %v992 = vmul.f32 %v988, 0.044715
        %v993 = vadd.f32 %v977, %v989
        %v994 = vadd.f32 %v978, %v990
        %v995 = vadd.f32 %v979, %v991
        %v996 = vadd.f32 %v980, %v992
        %v997 = vmul.f32 %v993, 0.7978846
        %v998 = vmul.f32 %v994, 0.7978846
        %v999 = vmul.f32 %v995, 0.7978846
        %v1000 = vmul.f32 %v996, 0.7978846
        %v1001 = vtanh.pop %v997
        %v1002 = vtanh.pop %v998
        %v1003 = vtanh.pop %v999
        %v1004 = vtanh.pop %v1000
        %v1005 = vadd.f32 %v1001, 1.0
        %v1006 = vadd.f32 %v1002, 1.0
        %v1007 = vadd.f32 %v1003, 1.0
        %v1008 = vadd.f32 %v1004, 1.0
        %v1009 = vmul.f32 %v1005, 0.5
        %v1010 = vmul.f32 %v1006, 0.5
        %v1011 = vmul.f32 %v1007, 0.5
        %v1012 = vmul.f32 %v1008, 0.5
        %v1013 = vmul.f32 %v977, %v1009
        %v1014 = vmul.f32 %v978, %v1010
        %v1015 = vmul.f32 %v979, %v1011
        %v1016 = vmul.f32 %v980, %v1012
        %v1017 = vld [vmem:[%s5] sm:$0xff]
        %v1018 = vld [vmem:[%s5 + $0x8] sm:$0xff]
        %v1019 = vld [vmem:[%s5 + $0x10] sm:$0xff]
        %v1020 = vld [vmem:[%s5 + $0x18] sm:$0xff]
        %v1021 = vld [vmem:[%s6] sm:$0x1]
        %v1023 = vlaneseq
        %v1024 = vshrl.u32 %v1023, 7
        %v1025 = vsub.s32 0, %v1024
        %v1026 = vrot.slane %v1021, %v1025
        %v1029 = vsel %vm805, %v1013, 0
        %v1032 = vsel %vm805, %v1014, 0
        %v1035 = vsel %vm805, %v1015, 0
        %v1038 = vsel %vm805, %v1016, 0
        %1040 = vmatprep.subr.mxu0 0.0
        %1041 = vmatpush1.msra.mxu0 %v1017
        %1042 = vmatprep.subr.mxu0 0.0
        %1043 = vmatpush1.msra.mxu0 %v1018
        %1044 = vmatprep.subr.mxu0 0.0
        %1045 = vmatpush1.msra.mxu0 %v1019
        %1046 = vmatprep.subr.mxu0 0.0
        %1047 = vmatpush1.msra.mxu0 %v1020
        %1048 = vmatprep.subr.mxu0 0.0
        %1049 = vmatpush1.msra.mxu0 0.0
        %1050 = vmatprep.subr.mxu0 0.0
        %1051 = vmatpush1.msra.mxu0 0.0
        %1052 = vmatprep.subr.mxu0 0.0
        %1053 = vmatpush1.msra.mxu0 0.0
        %1054 = vmatprep.subr.mxu0 0.0
        %1055 = vmatpush1.msra.mxu0 0.0
        %1056 = vmatprep.subr.mxu0 0.0
        %1057 = vmatpush1.msra.mxu0 0.0
        %1058 = vmatprep.subr.mxu0 0.0
        %1059 = vmatpush1.msra.mxu0 0.0
        %1060 = vmatprep.subr.mxu0 0.0
        %1061 = vmatpush1.msra.mxu0 0.0
        %1062 = vmatprep.subr.mxu0 0.0
        %1063 = vmatpush1.msra.mxu0 0.0
        %1064 = vmatprep.subr.mxu0 0.0
        %1065 = vmatpush1.msra.mxu0 0.0
        %1066 = vmatprep.subr.mxu0 0.0
        %1067 = vmatpush1.msra.mxu0 0.0
        %1068 = vmatprep.subr.mxu0 0.0
        %1069 = vmatpush1.msra.mxu0 0.0
        %1070 = vmatprep.subr.mxu0 0.0
        %1071 = vmatpush1.msra.mxu0 0.0
        %1072 = vmatprep.subr.mxu0 0.0
        %1073 = vmatpush1.msra.mxu0 0.0
        %1074 = vmatprep.subr.mxu0 0.0
        %1075 = vmatpush1.msra.mxu0 0.0
        %1076 = vmatprep.subr.mxu0 0.0
        %1077 = vmatpush1.msra.mxu0 0.0
        %1078 = vmatprep.subr.mxu0 0.0
        %1079 = vmatpush1.msra.mxu0 0.0
        %1080 = vmatprep.subr.mxu0 0.0
        %1081 = vmatpush1.msra.mxu0 0.0
        %1082 = vmatprep.subr.mxu0 0.0
        %1083 = vmatpush1.msra.mxu0 0.0
        %1084 = vmatprep.subr.mxu0 0.0
        %1085 = vmatpush1.msra.mxu0 0.0
        %1086 = vmatprep.subr.mxu0 0.0
        %1087 = vmatpush1.msra.mxu0 0.0
        %1088 = vmatprep.subr.mxu0 0.0
        %1089 = vmatpush1.msra.mxu0 0.0
        %1090 = vmatprep.subr.mxu0 0.0
        %1091 = vmatpush1.msra.mxu0 0.0
        %1092 = vmatprep.subr.mxu0 0.0
        %1093 = vmatpush1.msra.mxu0 0.0
        %1094 = vmatprep.subr.mxu0 0.0
        %1095 = vmatpush1.msra.mxu0 0.0
        %1096 = vmatprep.subr.mxu0 0.0
        %1097 = vmatpush1.msra.mxu0 0.0
        %1098 = vmatprep.subr.mxu0 0.0
        %1099 = vmatpush1.msra.mxu0 0.0
        %1100 = vmatprep.subr.mxu0 0.0
        %1101 = vmatpush1.msra.mxu0 0.0
        %1102 = vmatprep.subr.mxu0 0.0
        %1103 = vmatpush1.msra.mxu0 0.0
        %1104 = vmatprep.mubr.f32.mxu0 0.0
        %1105 = vmatmul.mubr.f32.gmra.mrb[0].mxu0 %v1029
        %v1106 = vpop.f32.mrb[0].mxu0
        %v1107 = vadd.f32 %v1026, %v1106
        %v1108 = vpop.f32.mrb[0].mxu0
        %1109 = vmatprep.mubr.f32.mxu0 0.0
        %1110 = vmatmul.mubr.f32.gmra.mrb[0].mxu0 %v1032
        %v1111 = vpop.f32.mrb[0].mxu0
        %v1112 = vadd.f32 %v1026, %v1111
        %v1113 = vpop.f32.mrb[0].mxu0
        %1114 = vmatprep.mubr.f32.mxu0 0.0
        %1115 = vmatmul.mubr.f32.gmra.mrb[0].mxu0 %v1035
        %v1116 = vpop.f32.mrb[0].mxu0
        %v1117 = vadd.f32 %v1026, %v1116
        %v1118 = vpop.f32.mrb[0].mxu0
        %1119 = vmatprep.mubr.f32.mxu0 0.0
        %1120 = vmatmul.mubr.f32.gmra.mrb[0].mxu0 %v1038
        %v1121 = vpop.f32.mrb[0].mxu0
        %v1122 = vadd.f32 %v1026, %v1121
        %v1123 = vpop.f32.mrb[0].mxu0
        %1124 = vdwg.mxu0
        %1125 = vst.msk [vmem:[%s400] sm:$0xff] %vm805, %v1107
        %1126 = vst.msk [vmem:[%s400 + $0x8] sm:$0xff] %vm805, %v1112
        %1127 = vst.msk [vmem:[%s400 + $0x10] sm:$0xff] %vm805, %v1117
        %1128 = vst.msk [vmem:[%s400 + $0x18] sm:$0xff] %vm805, %v1122
        %s1129 = smul.u32 4, %s23
        %p1130 = scmp.lt.s32.totalorder %s22, 1
        %s1131 = scalar_select %p1130, %s22, 1
        %p1132 = scmp.lt.s32.totalorder %s1129, 7
        %s1133 = scalar_select %p1132, %s1129, 7
        %s1134 = smul.addr %s1131, 8
        %s1135 = sadd.s32 %s1133, %s1134
        %s1136 = smul.addr %s1135, 8
        %s1137 = scalar_lea.vmem %s7, %s1136
        // Predicated region
        $region95: #{tpu_custom_call.1} parent=81 // pred_check
          %p1138 = pneg %p204
        $region96: #{tpu_custom_call.1} parent=81 // pred_check_branch
          %1140 = sbr.rel (%p1138) target = $region98
        $region97: #{tpu_custom_call.1} parent=81 // pred_region
          %s1141 = smul.u32 4, %s23
        $region98: #{tpu_custom_call.1} parent=81 // pred_fallthru
          _
      $region82: #{tpu_custom_call.1} parent=5 // pred_fallthru
        _
      %p1142 = scmp.le.s32.totalorder 2, %s13
      // Predicated region
      $region99: #{tpu_custom_call.1} parent=5 // pred_check
        %p1143 = pneg %p1142
      $region100: #{tpu_custom_call.1} parent=5 // pred_check_branch
        %1145 = sbr.rel (%p1143) target = $region102
      $region101: #{tpu_custom_call.1} parent=5 // pred_region
        %s1146 = ssub.s32 %s13, 2
        // Predicated region
        $region103: #{tpu_custom_call.1} parent=101 // pred_check
          %p1147 = pneg %p210
        $region104: #{tpu_custom_call.1} parent=101 // pred_check_branch
          %1149 = sbr.rel (%p1147) target = $region106
        $region105: #{tpu_custom_call.1} parent=101 // pred_region
          %s1150 = smul.u32 4, %s25
          %p1151 = scmp.lt.s32.totalorder %s24, 1
          %s1152 = scalar_select %p1151, %s24, 1
          %p1153 = scmp.lt.s32.totalorder %s1150, 7
          %s1154 = scalar_select %p1153, %s1150, 7
          %s1155 = smul.addr %s1152, 8
          %s1156 = sadd.s32 %s1154, %s1155
          %s1157 = smul.addr %s1156, 8
          %s1158 = scalar_lea.vmem %s7, %s1157
        $region106: #{tpu_custom_call.1} parent=101 // pred_fallthru
          _
      $region102: #{tpu_custom_call.1} parent=5 // pred_fallthru
        _
    $region6: #{tpu_custom_call.1} parent=1 // loop_footer
      %s17 = sadd.s32 1, %s13
    $region7: #{tpu_custom_call.1} parent=1 // loop_footer_branch
      %12 = sbr.rel target = $region3
    $region8: #{tpu_custom_call.1} parent=1 // loop_exit
      _

</llo_original>
